<compile_context>
chip_gen: v6e
topology: v6e:2x2x1
jax: 0.10.0
libtpu: 0.0.40
codegen_flags: <defaults>
</compile_context>

<pallas_src>
import math
import functools

import numpy as np
import jax
import jax.numpy as jnp
from jax.experimental import pallas as pl
from jax.experimental.pallas import tpu as pltpu


# ----------------------------- coeff field (plain JAX glue) ------------------------------

def _coeff_field(mlp, H, W):
    """MLP(coords) -> (n, S1, S2) f32 with S1=(h1,w1) flattened, S2=(h2,w2) flattened."""
    # TODO(synk): cell_centered_unit_grid convention assumed to be (i + 0.5) / size per dim.
    yh = 2.0 * (jnp.arange(H, dtype=jnp.float32) + 0.5) / H - 1.0
    xw = 2.0 * (jnp.arange(W, dtype=jnp.float32) + 0.5) / W - 1.0
    coords = jnp.stack(
        jnp.broadcast_arrays(
            yh[:, None, None, None], xw[None, :, None, None],
            yh[None, None, :, None], xw[None, None, None, :]),
        axis=-1)                                                   # (H, W, H, W, 4)
    h = jnp.einsum("...c,hc->...h", coords, mlp["w1"]) + mlp["b1"]
    h = jax.nn.gelu(h, approximate=False)      # exact erf GELU (torch nn.GELU() default)
    c = jnp.einsum("...k,nk->...n", h, mlp["w2"]) + mlp["b2"]      # (H, W, H, W, n)
    S = H * W
    n = mlp["w2"].shape[0]
    return jnp.transpose(c.reshape(S, S, n), (2, 0, 1))            # (n, S1, S2)


def _plan_s2_tiling(S, n, itemsize=2, budget_bytes=16 * 1024 * 1024):
    """Pick (ts2, S_pad): output-spatial tile and padded spatial extent.

    * double-buffered bf16 coeffs block (n, S, ts2) fits `budget_bytes` (<=16 MiB keeps
      headroom on every generation incl. v7x's 64 MiB physical VMEM),
    * at least 2 tiles whenever S >= 256 so the "parallel" axis shards over v7x's 2 TCs,
    * S not a multiple of 128 falls back to a 128-aligned tile with zero padding instead
      of silently blowing the VMEM budget with a full-extent block.
    """
    if S <= 128:
        return S, S
    per_col_bytes = 2 * n * S * itemsize                      # double-buffered stream
    max_ts2 = max(128, (budget_bytes // per_col_bytes) // 128 * 128)
    max_ts2 = min(max_ts2, max(128, (S // 2) // 128 * 128))   # force >= 2 grid steps
    if S % 128 == 0:
        for t in range(min(max_ts2, S), 0, -128):
            if S % t == 0:
                return t, S
    t = min(max_ts2, ((S + 127) // 128) * 128)
    s_pad = ((S + t - 1) // t) * t
    return t, s_pad


# ----------------------------------- Pallas kernel ---------------------------------------

def _rplo_kernel(vfull_ref, coeffs_ref, pbd_ref, wcbd_ref, bias_ref, o_ref, g_ref,
                 *, n_proj, ts2, bc_in):
    """One grid step = one S2 (output-spatial) tile, whole batch at once.

    vfull_ref : (B*C_in, S1)             f32 input, full spatial extent (grid-invariant)
    coeffs_ref: (1, n, S1, TS2)          bf16 MLP(coords) tile (contiguous HBM stream)
    pbd_ref   : (B*C_out, n*B*C_in)      f32 flattened batch-block-diag params / (H*W)
    wcbd_ref  : (B*C_out, B*C_in)        f32 batch-block-diag 1x1 conv weight
    bias_ref  : (B*C_out, TS2)           f32 conv bias + module bias, lane-dense
    o_ref     : (B*C_out, TS2)
    g_ref     : (n*B*C_in, TS2)          f32 VMEM scratch (stacked per-n projections)
    """
    # 1x1 conv + bias epilogue: slice the current S2 tile out of the resident input
    # (no duplicate streamed v operand).
    j = pl.program_id(0)
    start = j * ts2
    if ts2 % 128 == 0:
        start = pl.multiple_of(start, 128)
    v_tile = vfull_ref[:, pl.ds(start, ts2)]                        # (B*C_in, TS2) f32
    acc = jnp.dot(wcbd_ref[...], v_tile,
                  preferred_element_type=jnp.float32)                # (B*C_out, TS2)
    acc = acc + bias_ref[...]

    # Random-projection term: per projection component one MXU matmul over the full
    # spatial extent (K = S1, bf16 operands, f32 accumulation) into the scratch stack,
    # then ONE channel-remix matmul with K = n*B*C_in (instead of n tiny K=B*C_in dots).
    v_bf = vfull_ref[...].astype(jnp.bfloat16)                       # (B*C_in, S1)
    for nn in range(n_proj):                      # static unroll; n_proj is small
        g_ref[nn * bc_in:(nn + 1) * bc_in, :] = jnp.dot(
            v_bf, coeffs_ref[0, nn], preferred_element_type=jnp.float32)
    acc = acc + jnp.dot(pbd_ref[...], g_ref[...],
                        preferred_element_type=jnp.float32)          # (B*C_out, TS2)

    o_ref[...] = acc.astype(o_ref.dtype)


# --------------------------------- module (params + fwd) ---------------------------------

def make_params(key, in_channels, out_channels, n):
    ks = jax.random.split(key, 8)
    std_p = 1.0 / math.sqrt(n * in_channels)
    lim1 = 1.0 / math.sqrt(4.0)
    lim2 = 1.0 / math.sqrt(8.0)
    limc = 1.0 / math.sqrt(in_channels)
    return dict(
        # nn.Parameter(randn(n, C_out, C_in) / sqrt(n * C_in))
        params=jax.random.normal(ks[0], (n, out_channels, in_channels), jnp.float32) * std_p,
        # coeff_mlp = Linear(4, 8) -> GELU -> Linear(8, n)   (default PyTorch Linear init)
        mlp=dict(
            w1=jax.random.uniform(ks[1], (8, 4), jnp.float32, -lim1, lim1),
            b1=jax.random.uniform(ks[2], (8,), jnp.float32, -lim1, lim1),
            w2=jax.random.uniform(ks[3], (n, 8), jnp.float32, -lim2, lim2),
            b2=jax.random.uniform(ks[4], (n,), jnp.float32, -lim2, lim2),
        ),
        # Conv2d(C_in, C_out, kernel_size=1)
        conv_w=jax.random.uniform(ks[5], (out_channels, in_channels), jnp.float32, -limc, limc),
        conv_b=jax.random.uniform(ks[6], (out_channels,), jnp.float32, -limc, limc),
        # LinearOperator2dBase bias (C_out, 1, 1), uniform(-1/sqrt(C_in), 1/sqrt(C_in))
        bias=jax.random.uniform(ks[7], (out_channels,), jnp.float32, -limc, limc),
    )


def random_project_linear_operator(params, v, *, n):
    B, C_in, H, W = v.shape
    C_out = params["conv_w"].shape[0]
    S = H * W
    assert params["params"].shape == (n, C_out, C_in)

    # ---- input-independent precompute (glue): coeff field + batch-block-diag weights ----
    # (in a real deployment this is computed once per (H, W) and cached)
    coeffs = _coeff_field(params["mlp"], H, W)                     # (n, S, S) f32

    ts2, S_pad = _plan_s2_tiling(S, n)
    num_tiles = S_pad // ts2

    v2 = v.reshape(B * C_in, S).astype(jnp.float32)                # lane-dense 2-D input
    if S_pad != S:
        # zero-pad both spatial axes: padded s1 contributes 0, padded s2 is sliced off.
        coeffs = jnp.pad(coeffs, ((0, 0), (0, S_pad - S), (0, S_pad - S)))
        v2 = jnp.pad(v2, ((0, 0), (0, S_pad - S)))

    # bf16 coeffs, pre-tiled so each grid step's block is contiguous in HBM:
    # (n, S1, S2) -> (num_tiles, n, S1, ts2)
    coeffs_t = (coeffs.astype(jnp.bfloat16)
                .reshape(n, S_pad, num_tiles, ts2)
                .transpose(2, 0, 1, 3))

    eye_b = jnp.eye(B, dtype=jnp.float32)
    p_scaled = params["params"].astype(jnp.float32) * (1.0 / S)    # fold 1/(H*W) into params
    # pbd_flat[(b,o), (nn,b',i)] = p_scaled[nn,o,i] * (b==b')  ->  (B*C_out, n*B*C_in)
    pbd = eye_b[None, :, None, :, None] * p_scaled[:, None, :, None, :]   # (n,B,Co,B,Ci)
    pbd_flat = jnp.transpose(pbd, (1, 2, 0, 3, 4)).reshape(B * C_out, n * B * C_in)
    wcbd = (eye_b[:, None, :, None] * params["conv_w"][None, :, None, :]
            ).reshape(B * C_out, B * C_in)

    bias_total = params["conv_b"] + params["bias"]                 # (C_out,)
    bias_bd = jnp.broadcast_to(jnp.tile(bias_total, (B,))[:, None], (B * C_out, ts2))

    # Explicit VMEM limit sized from the actual footprint (generation-safe).
    coeffs_block_b = n * S_pad * ts2 * 2                           # bf16, per buffer
    resident_b = (B * C_in * S_pad + B * C_out * (n * B * C_in)
                  + B * C_out * B * C_in + B * C_out * ts2) * 4
    out_block_b = B * C_out * ts2 * 4
    scratch_b = n * B * C_in * ts2 * 4
    needed = 2 * coeffs_block_b + 2 * (resident_b + out_block_b) + scratch_b
    vmem_limit = int(min(max(needed + (8 << 20), 32 << 20), 48 << 20))

    out = pl.pallas_call(
        functools.partial(_rplo_kernel, n_proj=n, ts2=ts2, bc_in=B * C_in),
        out_shape=jax.ShapeDtypeStruct((B * C_out, S_pad), jnp.float32),
        grid=(num_tiles,),
        in_specs=[
            pl.BlockSpec((B * C_in, S_pad), lambda j: (0, 0)),            # v, full spatial
            pl.BlockSpec((1, n, S_pad, ts2), lambda j: (j, 0, 0, 0)),     # coeffs (streams)
            pl.BlockSpec((B * C_out, n * B * C_in), lambda j: (0, 0)),    # pbd_flat
            pl.BlockSpec((B * C_out, B * C_in), lambda j: (0, 0)),        # conv weight
            pl.BlockSpec((B * C_out, ts2), lambda j: (0, 0)),             # bias tile
        ],
        out_specs=pl.BlockSpec((B * C_out, ts2), lambda j: (0, j)),
        scratch_shapes=[pltpu.VMEM((n * B * C_in, ts2), jnp.float32)],
        compiler_params=pltpu.CompilerParams(
            dimension_semantics=("parallel",),
            vmem_limit_bytes=vmem_limit),
    )(v2, coeffs_t, pbd_flat, wcbd, bias_bd)

    if S_pad != S:
        out = out[:, :S]
    return out.reshape(B, C_out, H, W)


# ------------------------------ float64 numpy reference ----------------------------------

def _reference(params, v):
    f64 = lambda a: np.asarray(a, np.float64)
    w1, b1 = f64(params["mlp"]["w1"]), f64(params["mlp"]["b1"])
    w2, b2 = f64(params["mlp"]["w2"]), f64(params["mlp"]["b2"])
    pr, wc = f64(params["params"]), f64(params["conv_w"])
    cb, bb = f64(params["conv_b"]), f64(params["bias"])
    vn = f64(v)
    B, C_in, H, W = vn.shape
    yh = 2.0 * (np.arange(H) + 0.5) / H - 1.0
    xw = 2.0 * (np.arange(W) + 0.5) / W - 1.0
    coords = np.stack(
        np.broadcast_arrays(
            yh[:, None, None, None], xw[None, :, None, None],
            yh[None, None, :, None], xw[None, None, None, :]),
        axis=-1)                                                    # (H, W, H, W, 4)
    h = coords @ w1.T + b1
    erf = np.vectorize(math.erf)
    h = 0.5 * h * (1.0 + erf(h / math.sqrt(2.0)))                   # exact GELU
    coeffs = h @ w2.T + b2                                          # (H, W, H, W, n)
    t = np.einsum("xywzn,noi,bixy->bowz", coeffs, pr, vn, optimize=True) / (H * W)
    conv = np.einsum("oi,bixy->boxy", wc, vn)
    return t + conv + cb[None, :, None, None] + bb[None, :, None, None]


# --------------------------------------- main ---------------------------------------------

if __name__ == "__main__":
    B, C_in, C_out, H, W, N = 2, 4, 4, 16, 16, 16

    key = jax.random.PRNGKey(0)
    k_param, k_v = jax.random.split(key)
    params = make_params(k_param, C_in, C_out, N)
    v = jax.random.normal(k_v, (B, C_in, H, W), jnp.float32)

    fwd = jax.jit(functools.partial(random_project_linear_operator, n=N))
    out = jax.block_until_ready(fwd(params, v))
    assert out.shape == (B, C_out, H, W) and out.dtype == jnp.float32

    ref = _reference(params, v)
    err = float(np.max(np.abs(np.asarray(out, np.float64) - ref)))
    # 2e-3 tolerance vs f64: the streamed coeffs (and the projection's v operand) are bf16
    # with f32 MXU accumulation; the conv path and all accumulators stay f32.
    assert err < 2e-3, f"max abs error {err}"
    print("KERNEL_OK")
</pallas_src>

<mosaic_0001>
module attributes {stable_mosaic.version = 11 : i64} {
  func.func @_rplo_kernel(%arg0: i32, %arg1: memref<8x256xf32, #tpu.memory_space<vmem>>, %arg2: memref<1x16x256x128xbf16, #tpu.memory_space<vmem>>, %arg3: memref<8x128xf32, #tpu.memory_space<vmem>>, %arg4: memref<8x8xf32, #tpu.memory_space<vmem>>, %arg5: memref<8x128xf32, #tpu.memory_space<vmem>>, %arg6: memref<8x128xf32, #tpu.memory_space<vmem>>, %arg7: memref<128x128xf32, #tpu.memory_space<vmem>>) attributes {dimension_semantics = [#tpu.dimension_semantics<parallel>], iteration_bounds = array<i64: 2>, scalar_prefetch = 0 : i64, scratch_operands = 1 : i64, tpu.core_type = #tpu.core_type<tc>, window_params = [{pipeline_mode = #tpu.pipeline_mode<synchronous>, transform_indices = @transform_0, window_bounds = array<i64: 8, 256>}, {transform_indices = @transform_1, window_bounds = array<i64: 1, 16, 256, 128>}, {pipeline_mode = #tpu.pipeline_mode<synchronous>, transform_indices = @transform_2, window_bounds = array<i64: 8, 128>}, {pipeline_mode = #tpu.pipeline_mode<synchronous>, transform_indices = @transform_3, window_bounds = array<i64: 8, 8>}, {pipeline_mode = #tpu.pipeline_mode<synchronous>, transform_indices = @transform_4, window_bounds = array<i64: 8, 128>}, {transform_indices = @transform_5, window_bounds = array<i64: 8, 128>}]} {
    %c128_i32 = arith.constant 128 : i32
    %0 = arith.muli %arg0, %c128_i32 : i32
    %1 = tpu.assume_multiple %0, 128 : i32
    %c0 = arith.constant 0 : index
    %2 = arith.index_cast %1 : i32 to index
    %3 = vector.load %arg1[%c0, %2] : memref<8x256xf32, #tpu.memory_space<vmem>>, vector<8x128xf32>
    %c0_0 = arith.constant 0 : index
    %c0_1 = arith.constant 0 : index
    %4 = vector.load %arg4[%c0_0, %c0_1] : memref<8x8xf32, #tpu.memory_space<vmem>>, vector<8x8xf32>
    %cst = arith.constant dense<0.000000e+00> : vector<8x128xf32>
    %5 = tpu.matmul %4, %3, %cst {dimension_numbers = #tpu.dot_dimension_numbers<[1], [0], [0], [1], [0, 0, 1, 1], [], []>} : vector<8x8xf32>, vector<8x128xf32>, vector<8x128xf32> -> vector<8x128xf32>
    %c0_2 = arith.constant 0 : index
    %c0_3 = arith.constant 0 : index
    %6 = vector.load %arg5[%c0_2, %c0_3] : memref<8x128xf32, #tpu.memory_space<vmem>>, vector<8x128xf32>
    %7 = arith.addf %5, %6 : vector<8x128xf32>
    %c0_4 = arith.constant 0 : index
    %c0_5 = arith.constant 0 : index
    %8 = vector.load %arg1[%c0_4, %c0_5] : memref<8x256xf32, #tpu.memory_space<vmem>>, vector<8x256xf32>
    %9 = arith.truncf %8 : vector<8x256xf32> to vector<8x256xbf16>
    %c0_6 = arith.constant 0 : index
    %c0_7 = arith.constant 0 : index
    %c0_8 = arith.constant 0 : index
    %c0_9 = arith.constant 0 : index
    %10 = vector.load %arg2[%c0_6, %c0_7, %c0_8, %c0_9] : memref<1x16x256x128xbf16, #tpu.memory_space<vmem>>, vector<1x1x256x128xbf16>
    %11 = vector.shape_cast %10 : vector<1x1x256x128xbf16> to vector<256x128xbf16>
    %cst_10 = arith.constant dense<0.000000e+00> : vector<8x128xf32>
    %12 = tpu.matmul %9, %11, %cst_10 {dimension_numbers = #tpu.dot_dimension_numbers<[1], [0], [0], [1], [0, 0, 1, 1], [], []>} : vector<8x256xbf16>, vector<256x128xbf16>, vector<8x128xf32> -> vector<8x128xf32>
    %c0_11 = arith.constant 0 : index
    %c0_12 = arith.constant 0 : index
    %13 = vector.load %arg7[%c0_11, %c0_12] : memref<128x128xf32, #tpu.memory_space<vmem>>, vector<8x128xf32>
    tpu.vector_store %arg7[%c0_11, %c0_12], %12 {strides = array<i32>} : memref<128x128xf32, #tpu.memory_space<vmem>>, vector<8x128xf32>,
    %c0_13 = arith.constant 0 : index
    %c1 = arith.constant 1 : index
    %c0_14 = arith.constant 0 : index
    %c0_15 = arith.constant 0 : index
    %14 = vector.load %arg2[%c0_13, %c1, %c0_14, %c0_15] : memref<1x16x256x128xbf16, #tpu.memory_space<vmem>>, vector<1x1x256x128xbf16>
    %15 = vector.shape_cast %14 : vector<1x1x256x128xbf16> to vector<256x128xbf16>
    %cst_16 = arith.constant dense<0.000000e+00> : vector<8x128xf32>
    %16 = tpu.matmul %9, %15, %cst_16 {dimension_numbers = #tpu.dot_dimension_numbers<[1], [0], [0], [1], [0, 0, 1, 1], [], []>} : vector<8x256xbf16>, vector<256x128xbf16>, vector<8x128xf32> -> vector<8x128xf32>
    %c8 = arith.constant 8 : index
    %c0_17 = arith.constant 0 : index
    %17 = vector.load %arg7[%c8, %c0_17] : memref<128x128xf32, #tpu.memory_space<vmem>>, vector<8x128xf32>
    tpu.vector_store %arg7[%c8, %c0_17], %16 {strides = array<i32>} : memref<128x128xf32, #tpu.memory_space<vmem>>, vector<8x128xf32>,
    %c0_18 = arith.constant 0 : index
    %c2 = arith.constant 2 : index
    %c0_19 = arith.constant 0 : index
    %c0_20 = arith.constant 0 : index
    %18 = vector.load %arg2[%c0_18, %c2, %c0_19, %c0_20] : memref<1x16x256x128xbf16, #tpu.memory_space<vmem>>, vector<1x1x256x128xbf16>
    %19 = vector.shape_cast %18 : vector<1x1x256x128xbf16> to vector<256x128xbf16>
    %cst_21 = arith.constant dense<0.000000e+00> : vector<8x128xf32>
    %20 = tpu.matmul %9, %19, %cst_21 {dimension_numbers = #tpu.dot_dimension_numbers<[1], [0], [0], [1], [0, 0, 1, 1], [], []>} : vector<8x256xbf16>, vector<256x128xbf16>, vector<8x128xf32> -> vector<8x128xf32>
    %c16 = arith.constant 16 : index
    %c0_22 = arith.constant 0 : index
    %21 = vector.load %arg7[%c16, %c0_22] : memref<128x128xf32, #tpu.memory_space<vmem>>, vector<8x128xf32>
    tpu.vector_store %arg7[%c16, %c0_22], %20 {strides = array<i32>} : memref<128x128xf32, #tpu.memory_space<vmem>>, vector<8x128xf32>,
    %c0_23 = arith.constant 0 : index
    %c3 = arith.constant 3 : index
    %c0_24 = arith.constant 0 : index
    %c0_25 = arith.constant 0 : index
    %22 = vector.load %arg2[%c0_23, %c3, %c0_24, %c0_25] : memref<1x16x256x128xbf16, #tpu.memory_space<vmem>>, vector<1x1x256x128xbf16>
    %23 = vector.shape_cast %22 : vector<1x1x256x128xbf16> to vector<256x128xbf16>
    %cst_26 = arith.constant dense<0.000000e+00> : vector<8x128xf32>
    %24 = tpu.matmul %9, %23, %cst_26 {dimension_numbers = #tpu.dot_dimension_numbers<[1], [0], [0], [1], [0, 0, 1, 1], [], []>} : vector<8x256xbf16>, vector<256x128xbf16>, vector<8x128xf32> -> vector<8x128xf32>
    %c24 = arith.constant 24 : index
    %c0_27 = arith.constant 0 : index
    %25 = vector.load %arg7[%c24, %c0_27] : memref<128x128xf32, #tpu.memory_space<vmem>>, vector<8x128xf32>
    tpu.vector_store %arg7[%c24, %c0_27], %24 {strides = array<i32>} : memref<128x128xf32, #tpu.memory_space<vmem>>, vector<8x128xf32>,
    %c0_28 = arith.constant 0 : index
    %c4 = arith.constant 4 : index
    %c0_29 = arith.constant 0 : index
    %c0_30 = arith.constant 0 : index
    %26 = vector.load %arg2[%c0_28, %c4, %c0_29, %c0_30] : memref<1x16x256x128xbf16, #tpu.memory_space<vmem>>, vector<1x1x256x128xbf16>
    %27 = vector.shape_cast %26 : vector<1x1x256x128xbf16> to vector<256x128xbf16>
    %cst_31 = arith.constant dense<0.000000e+00> : vector<8x128xf32>
    %28 = tpu.matmul %9, %27, %cst_31 {dimension_numbers = #tpu.dot_dimension_numbers<[1], [0], [0], [1], [0, 0, 1, 1], [], []>} : vector<8x256xbf16>, vector<256x128xbf16>, vector<8x128xf32> -> vector<8x128xf32>
    %c32 = arith.constant 32 : index
    %c0_32 = arith.constant 0 : index
    %29 = vector.load %arg7[%c32, %c0_32] : memref<128x128xf32, #tpu.memory_space<vmem>>, vector<8x128xf32>
    tpu.vector_store %arg7[%c32, %c0_32], %28 {strides = array<i32>} : memref<128x128xf32, #tpu.memory_space<vmem>>, vector<8x128xf32>,
    %c0_33 = arith.constant 0 : index
    %c5 = arith.constant 5 : index
    %c0_34 = arith.constant 0 : index
    %c0_35 = arith.constant 0 : index
    %30 = vector.load %arg2[%c0_33, %c5, %c0_34, %c0_35] : memref<1x16x256x128xbf16, #tpu.memory_space<vmem>>, vector<1x1x256x128xbf16>
    %31 = vector.shape_cast %30 : vector<1x1x256x128xbf16> to vector<256x128xbf16>
    %cst_36 = arith.constant dense<0.000000e+00> : vector<8x128xf32>
    %32 = tpu.matmul %9, %31, %cst_36 {dimension_numbers = #tpu.dot_dimension_numbers<[1], [0], [0], [1], [0, 0, 1, 1], [], []>} : vector<8x256xbf16>, vector<256x128xbf16>, vector<8x128xf32> -> vector<8x128xf32>
    %c40 = arith.constant 40 : index
    %c0_37 = arith.constant 0 : index
    %33 = vector.load %arg7[%c40, %c0_37] : memref<128x128xf32, #tpu.memory_space<vmem>>, vector<8x128xf32>
    tpu.vector_store %arg7[%c40, %c0_37], %32 {strides = array<i32>} : memref<128x128xf32, #tpu.memory_space<vmem>>, vector<8x128xf32>,
    %c0_38 = arith.constant 0 : index
    %c6 = arith.constant 6 : index
    %c0_39 = arith.constant 0 : index
    %c0_40 = arith.constant 0 : index
    %34 = vector.load %arg2[%c0_38, %c6, %c0_39, %c0_40] : memref<1x16x256x128xbf16, #tpu.memory_space<vmem>>, vector<1x1x256x128xbf16>
    %35 = vector.shape_cast %34 : vector<1x1x256x128xbf16> to vector<256x128xbf16>
    %cst_41 = arith.constant dense<0.000000e+00> : vector<8x128xf32>
    %36 = tpu.matmul %9, %35, %cst_41 {dimension_numbers = #tpu.dot_dimension_numbers<[1], [0], [0], [1], [0, 0, 1, 1], [], []>} : vector<8x256xbf16>, vector<256x128xbf16>, vector<8x128xf32> -> vector<8x128xf32>
    %c48 = arith.constant 48 : index
    %c0_42 = arith.constant 0 : index
    %37 = vector.load %arg7[%c48, %c0_42] : memref<128x128xf32, #tpu.memory_space<vmem>>, vector<8x128xf32>
    tpu.vector_store %arg7[%c48, %c0_42], %36 {strides = array<i32>} : memref<128x128xf32, #tpu.memory_space<vmem>>, vector<8x128xf32>,
    %c0_43 = arith.constant 0 : index
    %c7 = arith.constant 7 : index
    %c0_44 = arith.constant 0 : index
    %c0_45 = arith.constant 0 : index
    %38 = vector.load %arg2[%c0_43, %c7, %c0_44, %c0_45] : memref<1x16x256x128xbf16, #tpu.memory_space<vmem>>, vector<1x1x256x128xbf16>
    %39 = vector.shape_cast %38 : vector<1x1x256x128xbf16> to vector<256x128xbf16>
    %cst_46 = arith.constant dense<0.000000e+00> : vector<8x128xf32>
    %40 = tpu.matmul %9, %39, %cst_46 {dimension_numbers = #tpu.dot_dimension_numbers<[1], [0], [0], [1], [0, 0, 1, 1], [], []>} : vector<8x256xbf16>, vector<256x128xbf16>, vector<8x128xf32> -> vector<8x128xf32>
    %c56 = arith.constant 56 : index
    %c0_47 = arith.constant 0 : index
    %41 = vector.load %arg7[%c56, %c0_47] : memref<128x128xf32, #tpu.memory_space<vmem>>, vector<8x128xf32>
    tpu.vector_store %arg7[%c56, %c0_47], %40 {strides = array<i32>} : memref<128x128xf32, #tpu.memory_space<vmem>>, vector<8x128xf32>,
    %c0_48 = arith.constant 0 : index
    %c8_49 = arith.constant 8 : index
    %c0_50 = arith.constant 0 : index
    %c0_51 = arith.constant 0 : index
    %42 = vector.load %arg2[%c0_48, %c8_49, %c0_50, %c0_51] : memref<1x16x256x128xbf16, #tpu.memory_space<vmem>>, vector<1x1x256x128xbf16>
    %43 = vector.shape_cast %42 : vector<1x1x256x128xbf16> to vector<256x128xbf16>
    %cst_52 = arith.constant dense<0.000000e+00> : vector<8x128xf32>
    %44 = tpu.matmul %9, %43, %cst_52 {dimension_numbers = #tpu.dot_dimension_numbers<[1], [0], [0], [1], [0, 0, 1, 1], [], []>} : vector<8x256xbf16>, vector<256x128xbf16>, vector<8x128xf32> -> vector<8x128xf32>
    %c64 = arith.constant 64 : index
    %c0_53 = arith.constant 0 : index
    %45 = vector.load %arg7[%c64, %c0_53] : memref<128x128xf32, #tpu.memory_space<vmem>>, vector<8x128xf32>
    tpu.vector_store %arg7[%c64, %c0_53], %44 {strides = array<i32>} : memref<128x128xf32, #tpu.memory_space<vmem>>, vector<8x128xf32>,
    %c0_54 = arith.constant 0 : index
    %c9 = arith.constant 9 : index
    %c0_55 = arith.constant 0 : index
    %c0_56 = arith.constant 0 : index
    %46 = vector.load %arg2[%c0_54, %c9, %c0_55, %c0_56] : memref<1x16x256x128xbf16, #tpu.memory_space<vmem>>, vector<1x1x256x128xbf16>
    %47 = vector.shape_cast %46 : vector<1x1x256x128xbf16> to vector<256x128xbf16>
    %cst_57 = arith.constant dense<0.000000e+00> : vector<8x128xf32>
    %48 = tpu.matmul %9, %47, %cst_57 {dimension_numbers = #tpu.dot_dimension_numbers<[1], [0], [0], [1], [0, 0, 1, 1], [], []>} : vector<8x256xbf16>, vector<256x128xbf16>, vector<8x128xf32> -> vector<8x128xf32>
    %c72 = arith.constant 72 : index
    %c0_58 = arith.constant 0 : index
    %49 = vector.load %arg7[%c72, %c0_58] : memref<128x128xf32, #tpu.memory_space<vmem>>, vector<8x128xf32>
    tpu.vector_store %arg7[%c72, %c0_58], %48 {strides = array<i32>} : memref<128x128xf32, #tpu.memory_space<vmem>>, vector<8x128xf32>,
    %c0_59 = arith.constant 0 : index
    %c10 = arith.constant 10 : index
    %c0_60 = arith.constant 0 : index
    %c0_61 = arith.constant 0 : index
    %50 = vector.load %arg2[%c0_59, %c10, %c0_60, %c0_61] : memref<1x16x256x128xbf16, #tpu.memory_space<vmem>>, vector<1x1x256x128xbf16>
    %51 = vector.shape_cast %50 : vector<1x1x256x128xbf16> to vector<256x128xbf16>
    %cst_62 = arith.constant dense<0.000000e+00> : vector<8x128xf32>
    %52 = tpu.matmul %9, %51, %cst_62 {dimension_numbers = #tpu.dot_dimension_numbers<[1], [0], [0], [1], [0, 0, 1, 1], [], []>} : vector<8x256xbf16>, vector<256x128xbf16>, vector<8x128xf32> -> vector<8x128xf32>
    %c80 = arith.constant 80 : index
    %c0_63 = arith.constant 0 : index
    %53 = vector.load %arg7[%c80, %c0_63] : memref<128x128xf32, #tpu.memory_space<vmem>>, vector<8x128xf32>
    tpu.vector_store %arg7[%c80, %c0_63], %52 {strides = array<i32>} : memref<128x128xf32, #tpu.memory_space<vmem>>, vector<8x128xf32>,
    %c0_64 = arith.constant 0 : index
    %c11 = arith.constant 11 : index
    %c0_65 = arith.constant 0 : index
    %c0_66 = arith.constant 0 : index
    %54 = vector.load %arg2[%c0_64, %c11, %c0_65, %c0_66] : memref<1x16x256x128xbf16, #tpu.memory_space<vmem>>, vector<1x1x256x128xbf16>
    %55 = vector.shape_cast %54 : vector<1x1x256x128xbf16> to vector<256x128xbf16>
    %cst_67 = arith.constant dense<0.000000e+00> : vector<8x128xf32>
    %56 = tpu.matmul %9, %55, %cst_67 {dimension_numbers = #tpu.dot_dimension_numbers<[1], [0], [0], [1], [0, 0, 1, 1], [], []>} : vector<8x256xbf16>, vector<256x128xbf16>, vector<8x128xf32> -> vector<8x128xf32>
    %c88 = arith.constant 88 : index
    %c0_68 = arith.constant 0 : index
    %57 = vector.load %arg7[%c88, %c0_68] : memref<128x128xf32, #tpu.memory_space<vmem>>, vector<8x128xf32>
    tpu.vector_store %arg7[%c88, %c0_68], %56 {strides = array<i32>} : memref<128x128xf32, #tpu.memory_space<vmem>>, vector<8x128xf32>,
    %c0_69 = arith.constant 0 : index
    %c12 = arith.constant 12 : index
    %c0_70 = arith.constant 0 : index
    %c0_71 = arith.constant 0 : index
    %58 = vector.load %arg2[%c0_69, %c12, %c0_70, %c0_71] : memref<1x16x256x128xbf16, #tpu.memory_space<vmem>>, vector<1x1x256x128xbf16>
    %59 = vector.shape_cast %58 : vector<1x1x256x128xbf16> to vector<256x128xbf16>
    %cst_72 = arith.constant dense<0.000000e+00> : vector<8x128xf32>
    %60 = tpu.matmul %9, %59, %cst_72 {dimension_numbers = #tpu.dot_dimension_numbers<[1], [0], [0], [1], [0, 0, 1, 1], [], []>} : vector<8x256xbf16>, vector<256x128xbf16>, vector<8x128xf32> -> vector<8x128xf32>
    %c96 = arith.constant 96 : index
    %c0_73 = arith.constant 0 : index
    %61 = vector.load %arg7[%c96, %c0_73] : memref<128x128xf32, #tpu.memory_space<vmem>>, vector<8x128xf32>
    tpu.vector_store %arg7[%c96, %c0_73], %60 {strides = array<i32>} : memref<128x128xf32, #tpu.memory_space<vmem>>, vector<8x128xf32>,
    %c0_74 = arith.constant 0 : index
    %c13 = arith.constant 13 : index
    %c0_75 = arith.constant 0 : index
    %c0_76 = arith.constant 0 : index
    %62 = vector.load %arg2[%c0_74, %c13, %c0_75, %c0_76] : memref<1x16x256x128xbf16, #tpu.memory_space<vmem>>, vector<1x1x256x128xbf16>
    %63 = vector.shape_cast %62 : vector<1x1x256x128xbf16> to vector<256x128xbf16>
    %cst_77 = arith.constant dense<0.000000e+00> : vector<8x128xf32>
    %64 = tpu.matmul %9, %63, %cst_77 {dimension_numbers = #tpu.dot_dimension_numbers<[1], [0], [0], [1], [0, 0, 1, 1], [], []>} : vector<8x256xbf16>, vector<256x128xbf16>, vector<8x128xf32> -> vector<8x128xf32>
    %c104 = arith.constant 104 : index
    %c0_78 = arith.constant 0 : index
    %65 = vector.load %arg7[%c104, %c0_78] : memref<128x128xf32, #tpu.memory_space<vmem>>, vector<8x128xf32>
    tpu.vector_store %arg7[%c104, %c0_78], %64 {strides = array<i32>} : memref<128x128xf32, #tpu.memory_space<vmem>>, vector<8x128xf32>,
    %c0_79 = arith.constant 0 : index
    %c14 = arith.constant 14 : index
    %c0_80 = arith.constant 0 : index
    %c0_81 = arith.constant 0 : index
    %66 = vector.load %arg2[%c0_79, %c14, %c0_80, %c0_81] : memref<1x16x256x128xbf16, #tpu.memory_space<vmem>>, vector<1x1x256x128xbf16>
    %67 = vector.shape_cast %66 : vector<1x1x256x128xbf16> to vector<256x128xbf16>
    %cst_82 = arith.constant dense<0.000000e+00> : vector<8x128xf32>
    %68 = tpu.matmul %9, %67, %cst_82 {dimension_numbers = #tpu.dot_dimension_numbers<[1], [0], [0], [1], [0, 0, 1, 1], [], []>} : vector<8x256xbf16>, vector<256x128xbf16>, vector<8x128xf32> -> vector<8x128xf32>
    %c112 = arith.constant 112 : index
    %c0_83 = arith.constant 0 : index
    %69 = vector.load %arg7[%c112, %c0_83] : memref<128x128xf32, #tpu.memory_space<vmem>>, vector<8x128xf32>
    tpu.vector_store %arg7[%c112, %c0_83], %68 {strides = array<i32>} : memref<128x128xf32, #tpu.memory_space<vmem>>, vector<8x128xf32>,
    %c0_84 = arith.constant 0 : index
    %c15 = arith.constant 15 : index
    %c0_85 = arith.constant 0 : index
    %c0_86 = arith.constant 0 : index
    %70 = vector.load %arg2[%c0_84, %c15, %c0_85, %c0_86] : memref<1x16x256x128xbf16, #tpu.memory_space<vmem>>, vector<1x1x256x128xbf16>
    %71 = vector.shape_cast %70 : vector<1x1x256x128xbf16> to vector<256x128xbf16>
    %cst_87 = arith.constant dense<0.000000e+00> : vector<8x128xf32>
    %72 = tpu.matmul %9, %71, %cst_87 {dimension_numbers = #tpu.dot_dimension_numbers<[1], [0], [0], [1], [0, 0, 1, 1], [], []>} : vector<8x256xbf16>, vector<256x128xbf16>, vector<8x128xf32> -> vector<8x128xf32>
    %c120 = arith.constant 120 : index
    %c0_88 = arith.constant 0 : index
    %73 = vector.load %arg7[%c120, %c0_88] : memref<128x128xf32, #tpu.memory_space<vmem>>, vector<8x128xf32>
    tpu.vector_store %arg7[%c120, %c0_88], %72 {strides = array<i32>} : memref<128x128xf32, #tpu.memory_space<vmem>>, vector<8x128xf32>,
    %c0_89 = arith.constant 0 : index
    %c0_90 = arith.constant 0 : index
    %74 = vector.load %arg3[%c0_89, %c0_90] : memref<8x128xf32, #tpu.memory_space<vmem>>, vector<8x128xf32>
    %c0_91 = arith.constant 0 : index
    %c0_92 = arith.constant 0 : index
    %75 = vector.load %arg7[%c0_91, %c0_92] : memref<128x128xf32, #tpu.memory_space<vmem>>, vector<128x128xf32>
    %cst_93 = arith.constant dense<0.000000e+00> : vector<8x128xf32>
    %76 = tpu.matmul %74, %75, %cst_93 {dimension_numbers = #tpu.dot_dimension_numbers<[1], [0], [0], [1], [0, 0, 1, 1], [], []>} : vector<8x128xf32>, vector<128x128xf32>, vector<8x128xf32> -> vector<8x128xf32>
    %77 = arith.addf %7, %76 : vector<8x128xf32>
    %c0_94 = arith.constant 0 : index
    %c0_95 = arith.constant 0 : index
    %78 = vector.load %arg6[%c0_94, %c0_95] : memref<8x128xf32, #tpu.memory_space<vmem>>, vector<8x128xf32>
    tpu.vector_store %arg6[%c0_94, %c0_95], %77 {strides = array<i32>} : memref<8x128xf32, #tpu.memory_space<vmem>>, vector<8x128xf32>,
    return
  }
  func.func @transform_0(%arg0: i32) -> (i32, i32) {
    %c0_i32 = arith.constant 0 : i32
    %c0_i32_0 = arith.constant 0 : i32
    %c0_i32_1 = arith.constant 0 : i32
    return %c0_i32, %c0_i32_0 : i32, i32
  }
  func.func @transform_1(%arg0: i32) -> (i32, i32, i32, i32) {
    %c0_i32 = arith.constant 0 : i32
    %c0_i32_0 = arith.constant 0 : i32
    %c0_i32_1 = arith.constant 0 : i32
    %c0_i32_2 = arith.constant 0 : i32
    return %arg0, %c0_i32, %c0_i32_0, %c0_i32_1 : i32, i32, i32, i32
  }
  func.func @transform_2(%arg0: i32) -> (i32, i32) {
    %c0_i32 = arith.constant 0 : i32
    %c0_i32_0 = arith.constant 0 : i32
    %c0_i32_1 = arith.constant 0 : i32
    return %c0_i32, %c0_i32_0 : i32, i32
  }
  func.func @transform_3(%arg0: i32) -> (i32, i32) {
    %c0_i32 = arith.constant 0 : i32
    %c0_i32_0 = arith.constant 0 : i32
    %c0_i32_1 = arith.constant 0 : i32
    return %c0_i32, %c0_i32_0 : i32, i32
  }
  func.func @transform_4(%arg0: i32) -> (i32, i32) {
    %c0_i32 = arith.constant 0 : i32
    %c0_i32_0 = arith.constant 0 : i32
    %c0_i32_1 = arith.constant 0 : i32
    return %c0_i32, %c0_i32_0 : i32, i32
  }
  func.func @transform_5(%arg0: i32) -> (i32, i32) {
    %c0_i32 = arith.constant 0 : i32
    %c0_i32_0 = arith.constant 0 : i32
    return %c0_i32, %arg0 : i32, i32
  }
}

</mosaic_0001>

<llo_original>
// kernel: tile.8
$region0: #{tile.8}
  #allocation0 [shape = 's32[1]{0}', space=sflag, size = 0x4, scoped, tag = 'scoped memory for tile.8']
  %s0 = inlined_call_operand.vmem [shape: f32[4], index: 0, kind: input, shape index: {}]
  %s1 = inlined_call_operand.vmem [shape: f32[2,4], index: 1, kind: output, shape index: {}]
  // Predicated region
  $region2: #{tile.8} parent=0 // pred_check
    _
  $region3: #{tile.8} parent=0 // pred_check_branch
    %3 = sbr.rel (0) target = $region5
  $region4: #{tile.8} parent=0 // pred_region
    _
  $region5: #{tile.8} parent=0 // pred_fallthru
    _
  %v4 = vld [vmem:[%s0] ss:$0 sm:$0xff]
  %5 = vst [vmem:[%s1] sm:$0x3] %v4

// kernel: random_project_linear_operator.1
$region0: #{random_project_linear_operator.1}
  #allocation0 [shape = 'u32[]', space=smem, size = 0x4, offset = 0x4, fixed_abs, tag = 'smem constant byte address 0x4 - core index']
  #allocation1 [shape = 'u32[144,128]{1,0:T(1,128)}', space=vmem, size = 0x12000, scoped, tag = 'internal scratch']
  #allocation2 [shape = 'f32[128,128]{1,0:T(8,128)}', space=vmem, size = 0x10000, scoped, tag = 'scratch operand']
  %s0 = inlined_call_operand.vmem [shape: f32[8,256], index: 0, kind: input, shape index: {}]
  %s1 = inlined_call_operand.vmem [shape: bf16[2,16,256,128], index: 1, kind: input, shape index: {}]
  %s2 = inlined_call_operand.vmem [shape: f32[8,128], index: 2, kind: input, shape index: {}]
  %s3 = inlined_call_operand.vmem [shape: f32[8,8], index: 3, kind: input, shape index: {}]
  %s4 = inlined_call_operand.vmem [shape: f32[8,128], index: 4, kind: input, shape index: {}]
  %s5 = inlined_call_operand.vmem [shape: f32[8,256], index: 5, kind: output, shape index: {}]
  %s6 = sld [smem:[#allocation0]]
  $region53: #{random_project_linear_operator.1} parent=0
    _
  %s8 = ssub.s32 1, %s6
  %s9 = scalar_select 0, %s8, %s6
  loop: start=0, step=1, limit=4
  $region2: #{random_project_linear_operator.1} parent=0 // loop_pre_header
    _
  $region3: #{random_project_linear_operator.1} parent=0 // loop_header
    %s11 = sphi 0, %s15
    %p12 = scmp.ge.s32.totalorder %s11, 4
    %s19 = sphi 0, %s19
    %s21 = sphi 0, %s19
    %s22 = sphi 0, %s21
    %s36 = sphi 0, %s22
    %s42 = sphi 0, %s44
    %s45 = sphi 0, %s42
    %s46 = sphi 0, %s45
    %s62 = sphi 0, %s46
    %s66 = sphi 0, %s66
    %s68 = sphi 0, %s66
    %s69 = sphi 0, %s68
    %s83 = sphi 0, %s69
    %s87 = sphi 0, %s87
    %s89 = sphi 0, %s87
    %s90 = sphi 0, %s89
    %s104 = sphi 0, %s90
    %s108 = sphi 0, %s108
    %s110 = sphi 0, %s108
    %s111 = sphi 0, %s110
    %s125 = sphi 0, %s111
    %s131 = sphi 0, %s133
    %s134 = sphi 0, %s131
    %s135 = sphi 0, %s134
    %s151 = sphi 0, %s135
  $region4: #{random_project_linear_operator.1} parent=0 // loop_header_branch
    %14 = sbr.rel (%p12) target = $region8
  $region5: #{random_project_linear_operator.1} parent=0 // loop_body
    %s16 = ssub.s32 %s11, 1
    %s17 = ssub.s32 %s11, 2
    %s18 = sadd.s32 %s11, 1
    %s20 = sadd.s32 %s19, 1
    %p23 = scmp.eq.s32.totalorder %s11, 1
    %p24 = scmp.ne.s32.totalorder %s19, %s21
    %p25 = scmp.eq.s32.totalorder %s11, 0
    %p26 = por %p24, %p25
    %p27 = scmp.ne.s32.totalorder %s19, %s21
    %p28 = scmp.eq.s32.totalorder %s16, 1
    %p29 = por %p27, %p28
    %p30 = scmp.ne.s32.totalorder %s21, %s22
    %p31 = scmp.eq.s32.totalorder %s16, 0
    %p32 = por %p30, %p31
    %p33 = scmp.ne.s32.totalorder %s21, %s22
    %p34 = scmp.eq.s32.totalorder %s17, 1
    %p35 = por %p33, %p34
    %p37 = scmp.ne.s32.totalorder %s22, %s36
    %p38 = scmp.eq.s32.totalorder %s17, 0
    %p39 = por %p37, %p38
    %s40 = ssub.s32 %s11, %s18
    %p41 = scmp.eq.s32.totalorder %s40, 0
    %s43 = sadd.s32 %s42, 1
    %s44 = scalar_select %p41, %s42, %s43
    %p47 = pneg %p41
    %p48 = scmp.eq.s32.totalorder %s11, 1
    %p49 = por %p47, %p48
    %p50 = scmp.ne.s32.totalorder %s42, %s45
    %p51 = scmp.eq.s32.totalorder %s11, 0
    %p52 = por %p50, %p51
    %p53 = scmp.ne.s32.totalorder %s42, %s45
    %p54 = scmp.eq.s32.totalorder %s16, 1
    %p55 = por %p53, %p54
    %p56 = scmp.ne.s32.totalorder %s45, %s46
    %p57 = scmp.eq.s32.totalorder %s16, 0
    %p58 = por %p56, %p57
    %p59 = scmp.ne.s32.totalorder %s45, %s46
    %p60 = scmp.eq.s32.totalorder %s17, 1
    %p61 = por %p59, %p60
    %p63 = scmp.ne.s32.totalorder %s46, %s62
    %p64 = scmp.eq.s32.totalorder %s17, 0
    %p65 = por %p63, %p64
    %s67 = sadd.s32 %s66, 1
    %p70 = scmp.eq.s32.totalorder %s11, 1
    %p71 = scmp.ne.s32.totalorder %s66, %s68
    %p72 = scmp.eq.s32.totalorder %s11, 0
    %p73 = por %p71, %p72
    %p74 = scmp.ne.s32.totalorder %s66, %s68
    %p75 = scmp.eq.s32.totalorder %s16, 1
    %p76 = por %p74, %p75
    %p77 = scmp.ne.s32.totalorder %s68, %s69
    %p78 = scmp.eq.s32.totalorder %s16, 0
    %p79 = por %p77, %p78
    %p80 = scmp.ne.s32.totalorder %s68, %s69
    %p81 = scmp.eq.s32.totalorder %s17, 1
    %p82 = por %p80, %p81
    %p84 = scmp.ne.s32.totalorder %s69, %s83
    %p85 = scmp.eq.s32.totalorder %s17, 0
    %p86 = por %p84, %p85
    %s88 = sadd.s32 %s87, 1
    %p91 = scmp.eq.s32.totalorder %s11, 1
    %p92 = scmp.ne.s32.totalorder %s87, %s89
    %p93 = scmp.eq.s32.totalorder %s11, 0
    %p94 = por %p92, %p93
    %p95 = scmp.ne.s32.totalorder %s87, %s89
    %p96 = scmp.eq.s32.totalorder %s16, 1
    %p97 = por %p95, %p96
    %p98 = scmp.ne.s32.totalorder %s89, %s90
    %p99 = scmp.eq.s32.totalorder %s16, 0
    %p100 = por %p98, %p99
    %p101 = scmp.ne.s32.totalorder %s89, %s90
    %p102 = scmp.eq.s32.totalorder %s17, 1
    %p103 = por %p101, %p102
    %p105 = scmp.ne.s32.totalorder %s90, %s104
    %p106 = scmp.eq.s32.totalorder %s17, 0
    %p107 = por %p105, %p106
    %s109 = sadd.s32 %s108, 1
    %p112 = scmp.eq.s32.totalorder %s11, 1
    %p113 = scmp.ne.s32.totalorder %s108, %s110
    %p114 = scmp.eq.s32.totalorder %s11, 0
    %p115 = por %p113, %p114
    %p116 = scmp.ne.s32.totalorder %s108, %s110
    %p117 = scmp.eq.s32.totalorder %s16, 1
    %p118 = por %p116, %p117
    %p119 = scmp.ne.s32.totalorder %s110, %s111
    %p120 = scmp.eq.s32.totalorder %s16, 0
    %p121 = por %p119, %p120
    %p122 = scmp.ne.s32.totalorder %s110, %s111
    %p123 = scmp.eq.s32.totalorder %s17, 1
    %p124 = por %p122, %p123
    %p126 = scmp.ne.s32.totalorder %s111, %s125
    %p127 = scmp.eq.s32.totalorder %s17, 0
    %p128 = por %p126, %p127
    %s129 = ssub.s32 %s11, %s18
    %p130 = scmp.eq.s32.totalorder %s129, 0
    %s132 = sadd.s32 %s131, 1
    %s133 = scalar_select %p130, %s131, %s132
    %p136 = pneg %p130
    %p137 = scmp.eq.s32.totalorder %s11, 1
    %p138 = por %p136, %p137
    %p139 = scmp.ne.s32.totalorder %s131, %s134
    %p140 = scmp.eq.s32.totalorder %s11, 0
    %p141 = por %p139, %p140
    %p142 = scmp.ne.s32.totalorder %s131, %s134
    %p143 = scmp.eq.s32.totalorder %s16, 1
    %p144 = por %p142, %p143
    %p145 = scmp.ne.s32.totalorder %s134, %s135
    %p146 = scmp.eq.s32.totalorder %s16, 0
    %p147 = por %p145, %p146
    %p148 = scmp.ne.s32.totalorder %s134, %s135
    %p149 = scmp.eq.s32.totalorder %s17, 1
    %p150 = por %p148, %p149
    %p152 = scmp.ne.s32.totalorder %s135, %s151
    %p153 = scmp.eq.s32.totalorder %s17, 0
    %p154 = por %p152, %p153
    %p155 = scmp.le.s32.totalorder 1, %s11
    %p156 = scmp.lt.s32.totalorder %s11, 3
    %p157 = pnand %p155, %p156
    %p158 = pneg %p157
    // Predicated region
    $region9: #{random_project_linear_operator.1} parent=5 // pred_check
      _
    $region10: #{random_project_linear_operator.1} parent=5 // pred_check_branch
      %160 = sbr.rel (%p157) target = $region12
    $region11: #{random_project_linear_operator.1} parent=5 // pred_region
      %s161 = ssub.s32 %s11, 1
      // Predicated region
      $region13: #{random_project_linear_operator.1} parent=11 // pred_check
        %p162 = pneg %p32
      $region14: #{random_project_linear_operator.1} parent=11 // pred_check_branch
        %164 = sbr.rel (%p162) target = $region16
      $region15: #{random_project_linear_operator.1} parent=11 // pred_region
        _
      $region16: #{random_project_linear_operator.1} parent=11 // pred_fallthru
        _
      // Predicated region
      $region17: #{random_project_linear_operator.1} parent=11 // pred_check
        %p165 = pneg %p79
      $region18: #{random_project_linear_operator.1} parent=11 // pred_check_branch
        %167 = sbr.rel (%p165) target = $region20
      $region19: #{random_project_linear_operator.1} parent=11 // pred_region
        _
      $region20: #{random_project_linear_operator.1} parent=11 // pred_fallthru
        _
      // Predicated region
      $region21: #{random_project_linear_operator.1} parent=11 // pred_check
        %p168 = pneg %p100
      $region22: #{random_project_linear_operator.1} parent=11 // pred_check_branch
        %170 = sbr.rel (%p168) target = $region24
      $region23: #{random_project_linear_operator.1} parent=11 // pred_region
        _
      $region24: #{random_project_linear_operator.1} parent=11 // pred_fallthru
        _
      // Predicated region
      $region25: #{random_project_linear_operator.1} parent=11 // pred_check
        %p171 = pneg %p121
      $region26: #{random_project_linear_operator.1} parent=11 // pred_check_branch
        %173 = sbr.rel (%p171) target = $region28
      $region27: #{random_project_linear_operator.1} parent=11 // pred_region
        _
      $region28: #{random_project_linear_operator.1} parent=11 // pred_fallthru
        _
    $region12: #{random_project_linear_operator.1} parent=5 // pred_fallthru
      _
    %p174 = scmp.lt.s32.totalorder %s11, 2
    // Predicated region
    $region29: #{random_project_linear_operator.1} parent=5 // pred_check
      %p175 = pneg %p174
    $region30: #{random_project_linear_operator.1} parent=5 // pred_check_branch
      %177 = sbr.rel (%p175) target = $region32
    $region31: #{random_project_linear_operator.1} parent=5 // pred_region
      // Predicated region
      $region33: #{random_project_linear_operator.1} parent=31 // pred_check
        %p178 = pneg %p52
      $region34: #{random_project_linear_operator.1} parent=31 // pred_check_branch
        %180 = sbr.rel (%p178) target = $region36
      $region35: #{random_project_linear_operator.1} parent=31 // pred_region
        %p181 = scmp.lt.s32.totalorder %s11, 1
        %s182 = scalar_select %p181, %s11, 1
        %s183 = smul.addr %s182, 512
        %s184 = smul.addr %s183, 4
        %s185 = scalar_lea.vmem %s1, %s184
      $region36: #{random_project_linear_operator.1} parent=31 // pred_fallthru
        _
    $region32: #{random_project_linear_operator.1} parent=5 // pred_fallthru
      _
    %p186 = scmp.le.s32.totalorder 1, %s11
    %p187 = scmp.lt.s32.totalorder %s11, 3
    %p188 = pnand %p186, %p187
    %p189 = pneg %p188
    // Predicated region
    $region37: #{random_project_linear_operator.1} parent=5 // pred_check
      _
    $region38: #{random_project_linear_operator.1} parent=5 // pred_check_branch
      %191 = sbr.rel (%p188) target = $region40
    $region39: #{random_project_linear_operator.1} parent=5 // pred_region
      %s192 = ssub.s32 %s11, 1
      %p193 = pneg %p32
      %p194 = pneg %p29
      %p195 = scmp.lt.s32.totalorder %s16, 1
      %s196 = scalar_select %p195, %s16, 1
      %s197 = smul.addr %s196, 512
      %s198 = smul.addr %s197, 4
      %s199 = scalar_lea.vmem %s1, %s198
      %p200 = pneg %p58
      %p201 = pneg %p55
      %p202 = pneg %p79
      %p203 = pneg %p76
      %p204 = pneg %p100
      %p205 = pneg %p97
      %p206 = pneg %p121
      %p207 = pneg %p118
      %p208 = pneg %p147
      %p209 = pneg %p144
      %p210 = scmp.lt.s32.totalorder %s16, 1
      %s211 = scalar_select %p210, %s16, 1
      %s212 = smul.addr %s211, 8
      %s213 = scalar_lea.vmem %s5, %s212
      %p214 = scmp.lt.s32.totalorder %s16, 1
      %s215 = scalar_select %p214, %s16, 1
      %s216 = smul.addr %s215, 512
      %s217 = smul.addr %s216, 4
      %s218 = scalar_lea.vmem %s1, %s217
      %p219 = scmp.lt.s32.totalorder %s16, 1
      %s220 = scalar_select %p219, %s16, 1
      %s221 = smul.addr %s220, 8
      %s222 = scalar_lea.vmem %s5, %s221
      %s224 = smul.u32 %s16, 128
      %s225 = sshra.s32 %s224, 7
      %s226 = sand.u32 %s224, 127
      %s227 = smul.addr %s225, 8
      %s228 = scalar_lea.vmem %s0, %s227
      %v229 = vld [vmem:[%s228] sm:$0xff]
      %v230 = vld [vmem:[%s3] sm:$0xff]
      %v231 = vld [vmem:[%s4] sm:$0xff]
      %vm232 = vcmask 64512
      %v234 = vsel %vm232, %v230, 0
      %236 = vmatprep.subr.mxu0 0.0
      %237 = vmatpush1.msra.mxu0 0.0
      %238 = vmatprep.subr.mxu0 0.0
      %239 = vmatpush1.msra.mxu0 0.0
      %240 = vmatprep.subr.mxu0 0.0
      %241 = vmatpush1.msra.mxu0 0.0
      %242 = vmatprep.subr.mxu0 0.0
      %243 = vmatpush1.msra.mxu0 0.0
      %244 = vmatprep.subr.mxu0 0.0
      %245 = vmatpush1.msra.mxu0 0.0
      %246 = vmatprep.subr.mxu0 0.0
      %247 = vmatpush1.msra.mxu0 0.0
      %248 = vmatprep.subr.mxu0 0.0
      %249 = vmatpush1.msra.mxu0 0.0
      %250 = vmatprep.subr.mxu0 0.0
      %251 = vmatpush1.msra.mxu0 0.0
      %252 = vmatprep.subr.mxu0 0.0
      %253 = vmatpush1.msra.mxu0 0.0
      %254 = vmatprep.subr.mxu0 0.0
      %255 = vmatpush1.msra.mxu0 0.0
      %256 = vmatprep.subr.mxu0 0.0
      %257 = vmatpush1.msra.mxu0 0.0
      %258 = vmatprep.subr.mxu0 0.0
      %259 = vmatpush1.msra.mxu0 0.0
      %260 = vmatprep.subr.mxu0 0.0
      %261 = vmatpush1.msra.mxu0 0.0
      %262 = vmatprep.subr.mxu0 0.0
      %263 = vmatpush1.msra.mxu0 0.0
      %264 = vmatprep.subr.mxu0 0.0
      %265 = vmatpush1.msra.mxu0 0.0
      %266 = vmatprep.subr.mxu0 0.0
      %267 = vmatpush1.msra.mxu0 %v229
      %268 = vmatprep.subr.mxu0 0.0
      %269 = vmatpush2.msra.mxu0 0.0
      %270 = vmatprep.subr.mxu0 0.0
      %271 = vmatpush2.msra.mxu0 0.0
      %272 = vmatprep.subr.mxu0 0.0
      %273 = vmatpush2.msra.mxu0 0.0
      %274 = vmatprep.subr.mxu0 0.0
      %275 = vmatpush2.msra.mxu0 0.0
      %276 = vmatprep.subr.mxu0 0.0
      %277 = vmatpush2.msra.mxu0 0.0
      %278 = vmatprep.subr.mxu0 0.0
      %279 = vmatpush2.msra.mxu0 0.0
      %280 = vmatprep.subr.mxu0 0.0
      %281 = vmatpush2.msra.mxu0 0.0
      %282 = vmatprep.subr.mxu0 0.0
      %283 = vmatpush2.msra.mxu0 0.0
      %284 = vmatprep.subr.mxu0 0.0
      %285 = vmatpush2.msra.mxu0 0.0
      %286 = vmatprep.subr.mxu0 0.0
      %287 = vmatpush2.msra.mxu0 0.0
      %288 = vmatprep.subr.mxu0 0.0
      %289 = vmatpush2.msra.mxu0 0.0
      %290 = vmatprep.subr.mxu0 0.0
      %291 = vmatpush2.msra.mxu0 0.0
      %292 = vmatprep.subr.mxu0 0.0
      %293 = vmatpush2.msra.mxu0 0.0
      %294 = vmatprep.subr.mxu0 0.0
      %295 = vmatpush2.msra.mxu0 0.0
      %296 = vmatprep.subr.mxu0 0.0
      %297 = vmatpush2.msra.mxu0 0.0
      %298 = vmatprep.subr.mxu0 0.0
      %299 = vmatpush2.msra.mxu0 0.0
      %300 = vmatprep.mubr.f32.mxu0 0.0
      %301 = vmatmul.mubr.f32.gmra.mxu0 %v234
      %v302 = vpop.f32.mrf.mxu0
      %v303 = vadd.f32 %v231, %v302
      %v304 = vpop.f32.mrf.mxu0
      %305 = vdwg.mxu0
      %v306 = vld [vmem:[%s0] sm:$0xff]
      %v307 = vld [vmem:[%s0 + $0x8] sm:$0xff]
      %v308 = vpack.c.bf16 %v306, %v306
      %v309 = vpack.c.bf16 %v307, %v307
      %v310 = vld [vmem:[%s218] sm:$0xf]
      %v311 = vld [vmem:[%s218 + $0x4] sm:$0xf]
      %v312 = vld [vmem:[%s218 + $0x8] sm:$0xf]
      %v313 = vld [vmem:[%s218 + $0xc] sm:$0xf]
      %v314 = vld [vmem:[%s218 + $0x10] sm:$0xf]
      %v315 = vld [vmem:[%s218 + $0x14] sm:$0xf]
      %v316 = vld [vmem:[%s218 + $0x18] sm:$0xf]
      %v317 = vld [vmem:[%s218 + $0x1c] sm:$0xf]
      %v318 = vld [vmem:[%s218 + $0x20] sm:$0xf]
      %v319 = vld [vmem:[%s218 + $0x24] sm:$0xf]
      %v320 = vld [vmem:[%s218 + $0x28] sm:$0xf]
      %v321 = vld [vmem:[%s218 + $0x2c] sm:$0xf]
      %v322 = vld [vmem:[%s218 + $0x30] sm:$0xf]
      %v323 = vld [vmem:[%s218 + $0x34] sm:$0xf]
      %v324 = vld [vmem:[%s218 + $0x38] sm:$0xf]
      %v325 = vld [vmem:[%s218 + $0x3c] sm:$0xf]
      %v326 = vld [vmem:[%s218 + $0x40] sm:$0xf]
      %v327 = vld [vmem:[%s218 + $0x44] sm:$0xf]
      %v328 = vld [vmem:[%s218 + $0x48] sm:$0xf]
      %v329 = vld [vmem:[%s218 + $0x4c] sm:$0xf]
      %v330 = vld [vmem:[%s218 + $0x50] sm:$0xf]
      %v331 = vld [vmem:[%s218 + $0x54] sm:$0xf]
      %v332 = vld [vmem:[%s218 + $0x58] sm:$0xf]
      %v333 = vld [vmem:[%s218 + $0x5c] sm:$0xf]
      %v334 = vld [vmem:[%s218 + $0x60] sm:$0xf]
      %v335 = vld [vmem:[%s218 + $0x64] sm:$0xf]
      %v336 = vld [vmem:[%s218 + $0x68] sm:$0xf]
      %v337 = vld [vmem:[%s218 + $0x6c] sm:$0xf]
      %v338 = vld [vmem:[%s218 + $0x70] sm:$0xf]
      %v339 = vld [vmem:[%s218 + $0x74] sm:$0xf]
      %v340 = vld [vmem:[%s218 + $0x78] sm:$0xf]
      %v341 = vld [vmem:[%s218 + $0x7c] sm:$0xf]
      %v374 = vunpack.c.l.b16 %v310
      %v375 = vunpack.c.l.b16 %v311
      %v376 = vunpack.c.l.b16 %v312
      %v377 = vunpack.c.l.b16 %v313
      %v378 = vunpack.c.l.b16 %v314
      %v379 = vunpack.c.l.b16 %v315
      %v380 = vunpack.c.l.b16 %v316
      %v381 = vunpack.c.l.b16 %v317
      %v382 = vunpack.c.l.b16 %v318
      %v383 = vunpack.c.l.b16 %v319
      %v384 = vunpack.c.l.b16 %v320
      %v385 = vunpack.c.l.b16 %v321
      %v386 = vunpack.c.l.b16 %v322
      %v387 = vunpack.c.l.b16 %v323
      %v388 = vunpack.c.l.b16 %v324
      %v389 = vunpack.c.l.b16 %v325
      %v390 = vunpack.c.l.b16 %v326
      %v391 = vunpack.c.l.b16 %v327
      %v392 = vunpack.c.l.b16 %v328
      %v393 = vunpack.c.l.b16 %v329
      %v394 = vunpack.c.l.b16 %v330
      %v395 = vunpack.c.l.b16 %v331
      %v396 = vunpack.c.l.b16 %v332
      %v397 = vunpack.c.l.b16 %v333
      %v398 = vunpack.c.l.b16 %v334
      %v399 = vunpack.c.l.b16 %v335
      %v400 = vunpack.c.l.b16 %v336
      %v401 = vunpack.c.l.b16 %v337
      %v402 = vunpack.c.l.b16 %v338
      %v403 = vunpack.c.l.b16 %v339
      %v404 = vunpack.c.l.b16 %v340
      %v405 = vunpack.c.l.b16 %v341
      %v406 = vpack.c.b16 %v375, %v374
      %v407 = vpack.c.b16 %v377, %v376
      %v408 = vpack.c.b16 %v379, %v378
      %v409 = vpack.c.b16 %v381, %v380
      %v410 = vpack.c.b16 %v383, %v382
      %v411 = vpack.c.b16 %v385, %v384
      %v412 = vpack.c.b16 %v387, %v386
      %v413 = vpack.c.b16 %v389, %v388
      %v414 = vpack.c.b16 %v391, %v390
      %v415 = vpack.c.b16 %v393, %v392
      %v416 = vpack.c.b16 %v395, %v394
      %v417 = vpack.c.b16 %v397, %v396
      %v418 = vpack.c.b16 %v399, %v398
      %v419 = vpack.c.b16 %v401, %v400
      %v420 = vpack.c.b16 %v403, %v402
      %v421 = vpack.c.b16 %v405, %v404
      %438 = vmatprep.subr.bf16.mxu0 0
      %439 = vmatpush1.bf16.msra.mxu0 %v413
      %440 = vmatprep.subr.bf16.mxu0 0
      %441 = vmatpush1.bf16.msra.mxu0 %v412
      %442 = vmatprep.subr.bf16.mxu0 0
      %443 = vmatpush1.bf16.msra.mxu0 %v411
      %444 = vmatprep.subr.bf16.mxu0 0
      %445 = vmatpush1.bf16.msra.mxu0 %v410
      %446 = vmatprep.subr.bf16.mxu0 0
      %447 = vmatpush1.bf16.msra.mxu0 %v409
      %448 = vmatprep.subr.bf16.mxu0 0
      %449 = vmatpush1.bf16.msra.mxu0 %v408
      %450 = vmatprep.subr.bf16.mxu0 0
      %451 = vmatpush1.bf16.msra.mxu0 %v407
      %452 = vmatprep.subr.bf16.mxu0 0
      %453 = vmatpush1.bf16.msra.mxu0 %v406
      %454 = vmatprep.subr.bf16.mxu0 0
      %455 = vmatpush2.bf16.msra.mxu0 %v421
      %456 = vmatprep.subr.bf16.mxu0 0
      %457 = vmatpush2.bf16.msra.mxu0 %v420
      %458 = vmatprep.subr.bf16.mxu0 0
      %459 = vmatpush2.bf16.msra.mxu0 %v419
      %460 = vmatprep.subr.bf16.mxu0 0
      %461 = vmatpush2.bf16.msra.mxu0 %v418
      %462 = vmatprep.subr.bf16.mxu0 0
      %463 = vmatpush2.bf16.msra.mxu0 %v417
      %464 = vmatprep.subr.bf16.mxu0 0
      %465 = vmatpush2.bf16.msra.mxu0 %v416
      %466 = vmatprep.subr.bf16.mxu0 0
      %467 = vmatpush2.bf16.msra.mxu0 %v415
      %468 = vmatprep.subr.bf16.mxu0 0
      %469 = vmatpush2.bf16.msra.mxu0 %v414
      %470 = vmatprep.mubr.bf16.mxu0 %v309
      %471 = vmatmul.mubr.bf16.gmra.mxu0 %v308
      %v472 = vpop.f32.mrf.mxu0
      %v473 = vadd.f32 0.0, %v472
      %v474 = vpop.f32.mrf.mxu0
      %v475 = vpop.f32.mrf.mxu0
      %v476 = vpop.f32.mrf.mxu0
      %477 = vdwg.mxu0
      %478 = vst [vmem:[#allocation2] sm:$0xff] %v473
      %s479 = scalar_lea.vmem %s218, 128
      %v480 = vld [vmem:[%s479] sm:$0xf]
      %v481 = vld [vmem:[%s479 + $0x4] sm:$0xf]
      %v482 = vld [vmem:[%s479 + $0x8] sm:$0xf]
      %v483 = vld [vmem:[%s479 + $0xc] sm:$0xf]
      %v484 = vld [vmem:[%s479 + $0x10] sm:$0xf]
      %v485 = vld [vmem:[%s479 + $0x14] sm:$0xf]
      %v486 = vld [vmem:[%s479 + $0x18] sm:$0xf]
      %v487 = vld [vmem:[%s479 + $0x1c] sm:$0xf]
      %v488 = vld [vmem:[%s479 + $0x20] sm:$0xf]
      %v489 = vld [vmem:[%s479 + $0x24] sm:$0xf]
      %v490 = vld [vmem:[%s479 + $0x28] sm:$0xf]
      %v491 = vld [vmem:[%s479 + $0x2c] sm:$0xf]
      %v492 = vld [vmem:[%s479 + $0x30] sm:$0xf]
      %v493 = vld [vmem:[%s479 + $0x34] sm:$0xf]
      %v494 = vld [vmem:[%s479 + $0x38] sm:$0xf]
      %v495 = vld [vmem:[%s479 + $0x3c] sm:$0xf]
      %v496 = vld [vmem:[%s479 + $0x40] sm:$0xf]
      %v497 = vld [vmem:[%s479 + $0x44] sm:$0xf]
      %v498 = vld [vmem:[%s479 + $0x48] sm:$0xf]
      %v499 = vld [vmem:[%s479 + $0x4c] sm:$0xf]
      %v500 = vld [vmem:[%s479 + $0x50] sm:$0xf]
      %v501 = vld [vmem:[%s479 + $0x54] sm:$0xf]
      %v502 = vld [vmem:[%s479 + $0x58] sm:$0xf]
      %v503 = vld [vmem:[%s479 + $0x5c] sm:$0xf]
      %v504 = vld [vmem:[%s479 + $0x60] sm:$0xf]
      %v505 = vld [vmem:[%s479 + $0x64] sm:$0xf]
      %v506 = vld [vmem:[%s479 + $0x68] sm:$0xf]
      %v507 = vld [vmem:[%s479 + $0x6c] sm:$0xf]
      %v508 = vld [vmem:[%s479 + $0x70] sm:$0xf]
      %v509 = vld [vmem:[%s479 + $0x74] sm:$0xf]
      %v510 = vld [vmem:[%s479 + $0x78] sm:$0xf]
      %v511 = vld [vmem:[%s479 + $0x7c] sm:$0xf]
      %v544 = vunpack.c.l.b16 %v480
      %v545 = vunpack.c.l.b16 %v481
      %v546 = vunpack.c.l.b16 %v482
      %v547 = vunpack.c.l.b16 %v483
      %v548 = vunpack.c.l.b16 %v484
      %v549 = vunpack.c.l.b16 %v485
      %v550 = vunpack.c.l.b16 %v486
      %v551 = vunpack.c.l.b16 %v487
      %v552 = vunpack.c.l.b16 %v488
      %v553 = vunpack.c.l.b16 %v489
      %v554 = vunpack.c.l.b16 %v490
      %v555 = vunpack.c.l.b16 %v491
      %v556 = vunpack.c.l.b16 %v492
      %v557 = vunpack.c.l.b16 %v493
      %v558 = vunpack.c.l.b16 %v494
      %v559 = vunpack.c.l.b16 %v495
      %v560 = vunpack.c.l.b16 %v496
      %v561 = vunpack.c.l.b16 %v497
      %v562 = vunpack.c.l.b16 %v498
      %v563 = vunpack.c.l.b16 %v499
      %v564 = vunpack.c.l.b16 %v500
      %v565 = vunpack.c.l.b16 %v501
      %v566 = vunpack.c.l.b16 %v502
      %v567 = vunpack.c.l.b16 %v503
      %v568 = vunpack.c.l.b16 %v504
      %v569 = vunpack.c.l.b16 %v505
      %v570 = vunpack.c.l.b16 %v506
      %v571 = vunpack.c.l.b16 %v507
      %v572 = vunpack.c.l.b16 %v508
      %v573 = vunpack.c.l.b16 %v509
      %v574 = vunpack.c.l.b16 %v510
      %v575 = vunpack.c.l.b16 %v511
      %v576 = vpack.c.b16 %v545, %v544
      %v577 = vpack.c.b16 %v547, %v546
      %v578 = vpack.c.b16 %v549, %v548
      %v579 = vpack.c.b16 %v551, %v550
      %v580 = vpack.c.b16 %v553, %v552
      %v581 = vpack.c.b16 %v555, %v554
      %v582 = vpack.c.b16 %v557, %v556
      %v583 = vpack.c.b16 %v559, %v558
      %v584 = vpack.c.b16 %v561, %v560
      %v585 = vpack.c.b16 %v563, %v562
      %v586 = vpack.c.b16 %v565, %v564
      %v587 = vpack.c.b16 %v567, %v566
      %v588 = vpack.c.b16 %v569, %v568
      %v589 = vpack.c.b16 %v571, %v570
      %v590 = vpack.c.b16 %v573, %v572
      %v591 = vpack.c.b16 %v575, %v574
      %608 = vmatprep.subr.bf16.mxu0 0
      %609 = vmatpush1.bf16.msra.mxu0 %v583
      %610 = vmatprep.subr.bf16.mxu0 0
      %611 = vmatpush1.bf16.msra.mxu0 %v582
      %612 = vmatprep.subr.bf16.mxu0 0
      %613 = vmatpush1.bf16.msra.mxu0 %v581
      %614 = vmatprep.subr.bf16.mxu0 0
      %615 = vmatpush1.bf16.msra.mxu0 %v580
      %616 = vmatprep.subr.bf16.mxu0 0
      %617 = vmatpush1.bf16.msra.mxu0 %v579
      %618 = vmatprep.subr.bf16.mxu0 0
      %619 = vmatpush1.bf16.msra.mxu0 %v578
      %620 = vmatprep.subr.bf16.mxu0 0
      %621 = vmatpush1.bf16.msra.mxu0 %v577
      %622 = vmatprep.subr.bf16.mxu0 0
      %623 = vmatpush1.bf16.msra.mxu0 %v576
      %624 = vmatprep.subr.bf16.mxu0 0
      %625 = vmatpush2.bf16.msra.mxu0 %v591
      %626 = vmatprep.subr.bf16.mxu0 0
      %627 = vmatpush2.bf16.msra.mxu0 %v590
      %628 = vmatprep.subr.bf16.mxu0 0
      %629 = vmatpush2.bf16.msra.mxu0 %v589
      %630 = vmatprep.subr.bf16.mxu0 0
      %631 = vmatpush2.bf16.msra.mxu0 %v588
      %632 = vmatprep.subr.bf16.mxu0 0
      %633 = vmatpush2.bf16.msra.mxu0 %v587
      %634 = vmatprep.subr.bf16.mxu0 0
      %635 = vmatpush2.bf16.msra.mxu0 %v586
      %636 = vmatprep.subr.bf16.mxu0 0
      %637 = vmatpush2.bf16.msra.mxu0 %v585
      %638 = vmatprep.subr.bf16.mxu0 0
      %639 = vmatpush2.bf16.msra.mxu0 %v584
      %640 = vmatprep.mubr.bf16.mxu0 %v309
      %641 = vmatmul.mubr.bf16.gmra.mxu0 %v308
      %v642 = vpop.f32.mrf.mxu0
      %v643 = vadd.f32 0.0, %v642
      %v644 = vpop.f32.mrf.mxu0
      %v645 = vpop.f32.mrf.mxu0
      %v646 = vpop.f32.mrf.mxu0
      %647 = vdwg.mxu0
      %648 = vst [vmem:[#allocation2 + $0x8] sm:$0xff] %v643
      %s649 = scalar_lea.vmem %s218, 256
      %v650 = vld [vmem:[%s649] sm:$0xf]
      %v651 = vld [vmem:[%s649 + $0x4] sm:$0xf]
      %v652 = vld [vmem:[%s649 + $0x8] sm:$0xf]
      %v653 = vld [vmem:[%s649 + $0xc] sm:$0xf]
      %v654 = vld [vmem:[%s649 + $0x10] sm:$0xf]
      %v655 = vld [vmem:[%s649 + $0x14] sm:$0xf]
      %v656 = vld [vmem:[%s649 + $0x18] sm:$0xf]
      %v657 = vld [vmem:[%s649 + $0x1c] sm:$0xf]
      %v658 = vld [vmem:[%s649 + $0x20] sm:$0xf]
      %v659 = vld [vmem:[%s649 + $0x24] sm:$0xf]
      %v660 = vld [vmem:[%s649 + $0x28] sm:$0xf]
      %v661 = vld [vmem:[%s649 + $0x2c] sm:$0xf]
      %v662 = vld [vmem:[%s649 + $0x30] sm:$0xf]
      %v663 = vld [vmem:[%s649 + $0x34] sm:$0xf]
      %v664 = vld [vmem:[%s649 + $0x38] sm:$0xf]
      %v665 = vld [vmem:[%s649 + $0x3c] sm:$0xf]
      %v666 = vld [vmem:[%s649 + $0x40] sm:$0xf]
      %v667 = vld [vmem:[%s649 + $0x44] sm:$0xf]
      %v668 = vld [vmem:[%s649 + $0x48] sm:$0xf]
      %v669 = vld [vmem:[%s649 + $0x4c] sm:$0xf]
      %v670 = vld [vmem:[%s649 + $0x50] sm:$0xf]
      %v671 = vld [vmem:[%s649 + $0x54] sm:$0xf]
      %v672 = vld [vmem:[%s649 + $0x58] sm:$0xf]
      %v673 = vld [vmem:[%s649 + $0x5c] sm:$0xf]
      %v674 = vld [vmem:[%s649 + $0x60] sm:$0xf]
      %v675 = vld [vmem:[%s649 + $0x64] sm:$0xf]
      %v676 = vld [vmem:[%s649 + $0x68] sm:$0xf]
      %v677 = vld [vmem:[%s649 + $0x6c] sm:$0xf]
      %v678 = vld [vmem:[%s649 + $0x70] sm:$0xf]
      %v679 = vld [vmem:[%s649 + $0x74] sm:$0xf]
      %v680 = vld [vmem:[%s649 + $0x78] sm:$0xf]
      %v681 = vld [vmem:[%s649 + $0x7c] sm:$0xf]
      %v714 = vunpack.c.l.b16 %v650
      %v715 = vunpack.c.l.b16 %v651
      %v716 = vunpack.c.l.b16 %v652
      %v717 = vunpack.c.l.b16 %v653
      %v718 = vunpack.c.l.b16 %v654
      %v719 = vunpack.c.l.b16 %v655
      %v720 = vunpack.c.l.b16 %v656
      %v721 = vunpack.c.l.b16 %v657
      %v722 = vunpack.c.l.b16 %v658
      %v723 = vunpack.c.l.b16 %v659
      %v724 = vunpack.c.l.b16 %v660
      %v725 = vunpack.c.l.b16 %v661
      %v726 = vunpack.c.l.b16 %v662
      %v727 = vunpack.c.l.b16 %v663
      %v728 = vunpack.c.l.b16 %v664
      %v729 = vunpack.c.l.b16 %v665
      %v730 = vunpack.c.l.b16 %v666
      %v731 = vunpack.c.l.b16 %v667
      %v732 = vunpack.c.l.b16 %v668
      %v733 = vunpack.c.l.b16 %v669
      %v734 = vunpack.c.l.b16 %v670
      %v735 = vunpack.c.l.b16 %v671
      %v736 = vunpack.c.l.b16 %v672
      %v737 = vunpack.c.l.b16 %v673
      %v738 = vunpack.c.l.b16 %v674
      %v739 = vunpack.c.l.b16 %v675
      %v740 = vunpack.c.l.b16 %v676
      %v741 = vunpack.c.l.b16 %v677
      %v742 = vunpack.c.l.b16 %v678
      %v743 = vunpack.c.l.b16 %v679
      %v744 = vunpack.c.l.b16 %v680
      %v745 = vunpack.c.l.b16 %v681
      %v746 = vpack.c.b16 %v715, %v714
      %v747 = vpack.c.b16 %v717, %v716
      %v748 = vpack.c.b16 %v719, %v718
      %v749 = vpack.c.b16 %v721, %v720
      %v750 = vpack.c.b16 %v723, %v722
      %v751 = vpack.c.b16 %v725, %v724
      %v752 = vpack.c.b16 %v727, %v726
      %v753 = vpack.c.b16 %v729, %v728
      %v754 = vpack.c.b16 %v731, %v730
      %v755 = vpack.c.b16 %v733, %v732
      %v756 = vpack.c.b16 %v735, %v734
      %v757 = vpack.c.b16 %v737, %v736
      %v758 = vpack.c.b16 %v739, %v738
      %v759 = vpack.c.b16 %v741, %v740
      %v760 = vpack.c.b16 %v743, %v742
      %v761 = vpack.c.b16 %v745, %v744
      %778 = vmatprep.subr.bf16.mxu0 0
      %779 = vmatpush1.bf16.msra.mxu0 %v753
      %780 = vmatprep.subr.bf16.mxu0 0
      %781 = vmatpush1.bf16.msra.mxu0 %v752
      %782 = vmatprep.subr.bf16.mxu0 0
      %783 = vmatpush1.bf16.msra.mxu0 %v751
      %784 = vmatprep.subr.bf16.mxu0 0
      %785 = vmatpush1.bf16.msra.mxu0 %v750
      %786 = vmatprep.subr.bf16.mxu0 0
      %787 = vmatpush1.bf16.msra.mxu0 %v749
      %788 = vmatprep.subr.bf16.mxu0 0
      %789 = vmatpush1.bf16.msra.mxu0 %v748
      %790 = vmatprep.subr.bf16.mxu0 0
      %791 = vmatpush1.bf16.msra.mxu0 %v747
      %792 = vmatprep.subr.bf16.mxu0 0
      %793 = vmatpush1.bf16.msra.mxu0 %v746
      %794 = vmatprep.subr.bf16.mxu0 0
      %795 = vmatpush2.bf16.msra.mxu0 %v761
      %796 = vmatprep.subr.bf16.mxu0 0
      %797 = vmatpush2.bf16.msra.mxu0 %v760
      %798 = vmatprep.subr.bf16.mxu0 0
      %799 = vmatpush2.bf16.msra.mxu0 %v759
      %800 = vmatprep.subr.bf16.mxu0 0
      %801 = vmatpush2.bf16.msra.mxu0 %v758
      %802 = vmatprep.subr.bf16.mxu0 0
      %803 = vmatpush2.bf16.msra.mxu0 %v757
      %804 = vmatprep.subr.bf16.mxu0 0
      %805 = vmatpush2.bf16.msra.mxu0 %v756
      %806 = vmatprep.subr.bf16.mxu0 0
      %807 = vmatpush2.bf16.msra.mxu0 %v755
      %808 = vmatprep.subr.bf16.mxu0 0
      %809 = vmatpush2.bf16.msra.mxu0 %v754
      %810 = vmatprep.mubr.bf16.mxu0 %v309
      %811 = vmatmul.mubr.bf16.gmra.mxu0 %v308
      %v812 = vpop.f32.mrf.mxu0
      %v813 = vadd.f32 0.0, %v812
      %v814 = vpop.f32.mrf.mxu0
      %v815 = vpop.f32.mrf.mxu0
      %v816 = vpop.f32.mrf.mxu0
      %817 = vdwg.mxu0
      %818 = vst [vmem:[#allocation2 + $0x10] sm:$0xff] %v813
      %s819 = scalar_lea.vmem %s218, 384
      %v820 = vld [vmem:[%s819] sm:$0xf]
      %v821 = vld [vmem:[%s819 + $0x4] sm:$0xf]
      %v822 = vld [vmem:[%s819 + $0x8] sm:$0xf]
      %v823 = vld [vmem:[%s819 + $0xc] sm:$0xf]
      %v824 = vld [vmem:[%s819 + $0x10] sm:$0xf]
      %v825 = vld [vmem:[%s819 + $0x14] sm:$0xf]
      %v826 = vld [vmem:[%s819 + $0x18] sm:$0xf]
      %v827 = vld [vmem:[%s819 + $0x1c] sm:$0xf]
      %v828 = vld [vmem:[%s819 + $0x20] sm:$0xf]
      %v829 = vld [vmem:[%s819 + $0x24] sm:$0xf]
      %v830 = vld [vmem:[%s819 + $0x28] sm:$0xf]
      %v831 = vld [vmem:[%s819 + $0x2c] sm:$0xf]
      %v832 = vld [vmem:[%s819 + $0x30] sm:$0xf]
      %v833 = vld [vmem:[%s819 + $0x34] sm:$0xf]
      %v834 = vld [vmem:[%s819 + $0x38] sm:$0xf]
      %v835 = vld [vmem:[%s819 + $0x3c] sm:$0xf]
      %v836 = vld [vmem:[%s819 + $0x40] sm:$0xf]
      %v837 = vld [vmem:[%s819 + $0x44] sm:$0xf]
      %v838 = vld [vmem:[%s819 + $0x48] sm:$0xf]
      %v839 = vld [vmem:[%s819 + $0x4c] sm:$0xf]
      %v840 = vld [vmem:[%s819 + $0x50] sm:$0xf]
      %v841 = vld [vmem:[%s819 + $0x54] sm:$0xf]
      %v842 = vld [vmem:[%s819 + $0x58] sm:$0xf]
      %v843 = vld [vmem:[%s819 + $0x5c] sm:$0xf]
      %v844 = vld [vmem:[%s819 + $0x60] sm:$0xf]
      %v845 = vld [vmem:[%s819 + $0x64] sm:$0xf]
      %v846 = vld [vmem:[%s819 + $0x68] sm:$0xf]
      %v847 = vld [vmem:[%s819 + $0x6c] sm:$0xf]
      %v848 = vld [vmem:[%s819 + $0x70] sm:$0xf]
      %v849 = vld [vmem:[%s819 + $0x74] sm:$0xf]
      %v850 = vld [vmem:[%s819 + $0x78] sm:$0xf]
      %v851 = vld [vmem:[%s819 + $0x7c] sm:$0xf]
      %v884 = vunpack.c.l.b16 %v820
      %v885 = vunpack.c.l.b16 %v821
      %v886 = vunpack.c.l.b16 %v822
      %v887 = vunpack.c.l.b16 %v823
      %v888 = vunpack.c.l.b16 %v824
      %v889 = vunpack.c.l.b16 %v825
      %v890 = vunpack.c.l.b16 %v826
      %v891 = vunpack.c.l.b16 %v827
      %v892 = vunpack.c.l.b16 %v828
      %v893 = vunpack.c.l.b16 %v829
      %v894 = vunpack.c.l.b16 %v830
      %v895 = vunpack.c.l.b16 %v831
      %v896 = vunpack.c.l.b16 %v832
      %v897 = vunpack.c.l.b16 %v833
      %v898 = vunpack.c.l.b16 %v834
      %v899 = vunpack.c.l.b16 %v835
      %v900 = vunpack.c.l.b16 %v836
      %v901 = vunpack.c.l.b16 %v837
      %v902 = vunpack.c.l.b16 %v838
      %v903 = vunpack.c.l.b16 %v839
      %v904 = vunpack.c.l.b16 %v840
      %v905 = vunpack.c.l.b16 %v841
      %v906 = vunpack.c.l.b16 %v842
      %v907 = vunpack.c.l.b16 %v843
      %v908 = vunpack.c.l.b16 %v844
      %v909 = vunpack.c.l.b16 %v845
      %v910 = vunpack.c.l.b16 %v846
      %v911 = vunpack.c.l.b16 %v847
      %v912 = vunpack.c.l.b16 %v848
      %v913 = vunpack.c.l.b16 %v849
      %v914 = vunpack.c.l.b16 %v850
      %v915 = vunpack.c.l.b16 %v851
      %v916 = vpack.c.b16 %v885, %v884
      %v917 = vpack.c.b16 %v887, %v886
      %v918 = vpack.c.b16 %v889, %v888
      %v919 = vpack.c.b16 %v891, %v890
      %v920 = vpack.c.b16 %v893, %v892
      %v921 = vpack.c.b16 %v895, %v894
      %v922 = vpack.c.b16 %v897, %v896
      %v923 = vpack.c.b16 %v899, %v898
      %v924 = vpack.c.b16 %v901, %v900
      %v925 = vpack.c.b16 %v903, %v902
      %v926 = vpack.c.b16 %v905, %v904
      %v927 = vpack.c.b16 %v907, %v906
      %v928 = vpack.c.b16 %v909, %v908
      %v929 = vpack.c.b16 %v911, %v910
      %v930 = vpack.c.b16 %v913, %v912
      %v931 = vpack.c.b16 %v915, %v914
      %948 = vmatprep.subr.bf16.mxu0 0
      %949 = vmatpush1.bf16.msra.mxu0 %v923
      %950 = vmatprep.subr.bf16.mxu0 0
      %951 = vmatpush1.bf16.msra.mxu0 %v922
      %952 = vmatprep.subr.bf16.mxu0 0
      %953 = vmatpush1.bf16.msra.mxu0 %v921
      %954 = vmatprep.subr.bf16.mxu0 0
      %955 = vmatpush1.bf16.msra.mxu0 %v920
      %956 = vmatprep.subr.bf16.mxu0 0
      %957 = vmatpush1.bf16.msra.mxu0 %v919
      %958 = vmatprep.subr.bf16.mxu0 0
      %959 = vmatpush1.bf16.msra.mxu0 %v918
      %960 = vmatprep.subr.bf16.mxu0 0
      %961 = vmatpush1.bf16.msra.mxu0 %v917
      %962 = vmatprep.subr.bf16.mxu0 0
      %963 = vmatpush1.bf16.msra.mxu0 %v916
      %964 = vmatprep.subr.bf16.mxu0 0
      %965 = vmatpush2.bf16.msra.mxu0 %v931
      %966 = vmatprep.subr.bf16.mxu0 0
      %967 = vmatpush2.bf16.msra.mxu0 %v930
      %968 = vmatprep.subr.bf16.mxu0 0
      %969 = vmatpush2.bf16.msra.mxu0 %v929
      %970 = vmatprep.subr.bf16.mxu0 0
      %971 = vmatpush2.bf16.msra.mxu0 %v928
      %972 = vmatprep.subr.bf16.mxu0 0
      %973 = vmatpush2.bf16.msra.mxu0 %v927
      %974 = vmatprep.subr.bf16.mxu0 0
      %975 = vmatpush2.bf16.msra.mxu0 %v926
      %976 = vmatprep.subr.bf16.mxu0 0
      %977 = vmatpush2.bf16.msra.mxu0 %v925
      %978 = vmatprep.subr.bf16.mxu0 0
      %979 = vmatpush2.bf16.msra.mxu0 %v924
      %980 = vmatprep.mubr.bf16.mxu0 %v309
      %981 = vmatmul.mubr.bf16.gmra.mxu0 %v308
      %v982 = vpop.f32.mrf.mxu0
      %v983 = vadd.f32 0.0, %v982
      %v984 = vpop.f32.mrf.mxu0
      %v985 = vpop.f32.mrf.mxu0
      %v986 = vpop.f32.mrf.mxu0
      %987 = vdwg.mxu0
      %988 = vst [vmem:[#allocation2 + $0x18] sm:$0xff] %v983
      %s989 = scalar_lea.vmem %s218, 512
      %v990 = vld [vmem:[%s989] sm:$0xf]
      %v991 = vld [vmem:[%s989 + $0x4] sm:$0xf]
      %v992 = vld [vmem:[%s989 + $0x8] sm:$0xf]
      %v993 = vld [vmem:[%s989 + $0xc] sm:$0xf]
      %v994 = vld [vmem:[%s989 + $0x10] sm:$0xf]
      %v995 = vld [vmem:[%s989 + $0x14] sm:$0xf]
      %v996 = vld [vmem:[%s989 + $0x18] sm:$0xf]
      %v997 = vld [vmem:[%s989 + $0x1c] sm:$0xf]
      %v998 = vld [vmem:[%s989 + $0x20] sm:$0xf]
      %v999 = vld [vmem:[%s989 + $0x24] sm:$0xf]
      %v1000 = vld [vmem:[%s989 + $0x28] sm:$0xf]
      %v1001 = vld [vmem:[%s989 + $0x2c] sm:$0xf]
      %v1002 = vld [vmem:[%s989 + $0x30] sm:$0xf]
      %v1003 = vld [vmem:[%s989 + $0x34] sm:$0xf]
      %v1004 = vld [vmem:[%s989 + $0x38] sm:$0xf]
      %v1005 = vld [vmem:[%s989 + $0x3c] sm:$0xf]
      %v1006 = vld [vmem:[%s989 + $0x40] sm:$0xf]
      %v1007 = vld [vmem:[%s989 + $0x44] sm:$0xf]
      %v1008 = vld [vmem:[%s989 + $0x48] sm:$0xf]
      %v1009 = vld [vmem:[%s989 + $0x4c] sm:$0xf]
      %v1010 = vld [vmem:[%s989 + $0x50] sm:$0xf]
      %v1011 = vld [vmem:[%s989 + $0x54] sm:$0xf]
      %v1012 = vld [vmem:[%s989 + $0x58] sm:$0xf]
      %v1013 = vld [vmem:[%s989 + $0x5c] sm:$0xf]
      %v1014 = vld [vmem:[%s989 + $0x60] sm:$0xf]
      %v1015 = vld [vmem:[%s989 + $0x64] sm:$0xf]
      %v1016 = vld [vmem:[%s989 + $0x68] sm:$0xf]
      %v1017 = vld [vmem:[%s989 + $0x6c] sm:$0xf]
      %v1018 = vld [vmem:[%s989 + $0x70] sm:$0xf]
      %v1019 = vld [vmem:[%s989 + $0x74] sm:$0xf]
      %v1020 = vld [vmem:[%s989 + $0x78] sm:$0xf]
      %v1021 = vld [vmem:[%s989 + $0x7c] sm:$0xf]
      %v1054 = vunpack.c.l.b16 %v990
      %v1055 = vunpack.c.l.b16 %v991
      %v1056 = vunpack.c.l.b16 %v992
      %v1057 = vunpack.c.l.b16 %v993
      %v1058 = vunpack.c.l.b16 %v994
      %v1059 = vunpack.c.l.b16 %v995
      %v1060 = vunpack.c.l.b16 %v996
      %v1061 = vunpack.c.l.b16 %v997
      %v1062 = vunpack.c.l.b16 %v998
      %v1063 = vunpack.c.l.b16 %v999
      %v1064 = vunpack.c.l.b16 %v1000
      %v1065 = vunpack.c.l.b16 %v1001
      %v1066 = vunpack.c.l.b16 %v1002
      %v1067 = vunpack.c.l.b16 %v1003
      %v1068 = vunpack.c.l.b16 %v1004
      %v1069 = vunpack.c.l.b16 %v1005
      %v1070 = vunpack.c.l.b16 %v1006
      %v1071 = vunpack.c.l.b16 %v1007
      %v1072 = vunpack.c.l.b16 %v1008
      %v1073 = vunpack.c.l.b16 %v1009
      %v1074 = vunpack.c.l.b16 %v1010
      %v1075 = vunpack.c.l.b16 %v1011
      %v1076 = vunpack.c.l.b16 %v1012
      %v1077 = vunpack.c.l.b16 %v1013
      %v1078 = vunpack.c.l.b16 %v1014
      %v1079 = vunpack.c.l.b16 %v1015
      %v1080 = vunpack.c.l.b16 %v1016
      %v1081 = vunpack.c.l.b16 %v1017
      %v1082 = vunpack.c.l.b16 %v1018
      %v1083 = vunpack.c.l.b16 %v1019
      %v1084 = vunpack.c.l.b16 %v1020
      %v1085 = vunpack.c.l.b16 %v1021
      %v1086 = vpack.c.b16 %v1055, %v1054
      %v1087 = vpack.c.b16 %v1057, %v1056
      %v1088 = vpack.c.b16 %v1059, %v1058
      %v1089 = vpack.c.b16 %v1061, %v1060
      %v1090 = vpack.c.b16 %v1063, %v1062
      %v1091 = vpack.c.b16 %v1065, %v1064
      %v1092 = vpack.c.b16 %v1067, %v1066
      %v1093 = vpack.c.b16 %v1069, %v1068
      %v1094 = vpack.c.b16 %v1071, %v1070
      %v1095 = vpack.c.b16 %v1073, %v1072
      %v1096 = vpack.c.b16 %v1075, %v1074
      %v1097 = vpack.c.b16 %v1077, %v1076
      %v1098 = vpack.c.b16 %v1079, %v1078
      %v1099 = vpack.c.b16 %v1081, %v1080
      %v1100 = vpack.c.b16 %v1083, %v1082
      %v1101 = vpack.c.b16 %v1085, %v1084
      %1118 = vmatprep.subr.bf16.mxu0 0
      %1119 = vmatpush1.bf16.msra.mxu0 %v1093
      %1120 = vmatprep.subr.bf16.mxu0 0
      %1121 = vmatpush1.bf16.msra.mxu0 %v1092
      %1122 = vmatprep.subr.bf16.mxu0 0
      %1123 = vmatpush1.bf16.msra.mxu0 %v1091
      %1124 = vmatprep.subr.bf16.mxu0 0
      %1125 = vmatpush1.bf16.msra.mxu0 %v1090
      %1126 = vmatprep.subr.bf16.mxu0 0
      %1127 = vmatpush1.bf16.msra.mxu0 %v1089
      %1128 = vmatprep.subr.bf16.mxu0 0
      %1129 = vmatpush1.bf16.msra.mxu0 %v1088
      %1130 = vmatprep.subr.bf16.mxu0 0
      %1131 = vmatpush1.bf16.msra.mxu0 %v1087
      %1132 = vmatprep.subr.bf16.mxu0 0
      %1133 = vmatpush1.bf16.msra.mxu0 %v1086
      %1134 = vmatprep.subr.bf16.mxu0 0
      %1135 = vmatpush2.bf16.msra.mxu0 %v1101
      %1136 = vmatprep.subr.bf16.mxu0 0
      %1137 = vmatpush2.bf16.msra.mxu0 %v1100
      %1138 = vmatprep.subr.bf16.mxu0 0
      %1139 = vmatpush2.bf16.msra.mxu0 %v1099
      %1140 = vmatprep.subr.bf16.mxu0 0
      %1141 = vmatpush2.bf16.msra.mxu0 %v1098
      %1142 = vmatprep.subr.bf16.mxu0 0
      %1143 = vmatpush2.bf16.msra.mxu0 %v1097
      %1144 = vmatprep.subr.bf16.mxu0 0
      %1145 = vmatpush2.bf16.msra.mxu0 %v1096
      %1146 = vmatprep.subr.bf16.mxu0 0
      %1147 = vmatpush2.bf16.msra.mxu0 %v1095
      %1148 = vmatprep.subr.bf16.mxu0 0
      %1149 = vmatpush2.bf16.msra.mxu0 %v1094
      %1150 = vmatprep.mubr.bf16.mxu0 %v309
      %1151 = vmatmul.mubr.bf16.gmra.mxu0 %v308
      %v1152 = vpop.f32.mrf.mxu0
      %v1153 = vadd.f32 0.0, %v1152
      %v1154 = vpop.f32.mrf.mxu0
      %v1155 = vpop.f32.mrf.mxu0
      %v1156 = vpop.f32.mrf.mxu0
      %1157 = vdwg.mxu0
      %1158 = vst [vmem:[#allocation2 + $0x20] sm:$0xff] %v1153
      %s1159 = scalar_lea.vmem %s218, 640
      %v1160 = vld [vmem:[%s1159] sm:$0xf]
      %v1161 = vld [vmem:[%s1159 + $0x4] sm:$0xf]
      %v1162 = vld [vmem:[%s1159 + $0x8] sm:$0xf]
      %v1163 = vld [vmem:[%s1159 + $0xc] sm:$0xf]
      %v1164 = vld [vmem:[%s1159 + $0x10] sm:$0xf]
      %v1165 = vld [vmem:[%s1159 + $0x14] sm:$0xf]
      %v1166 = vld [vmem:[%s1159 + $0x18] sm:$0xf]
      %v1167 = vld [vmem:[%s1159 + $0x1c] sm:$0xf]
      %v1168 = vld [vmem:[%s1159 + $0x20] sm:$0xf]
      %v1169 = vld [vmem:[%s1159 + $0x24] sm:$0xf]
      %v1170 = vld [vmem:[%s1159 + $0x28] sm:$0xf]
      %v1171 = vld [vmem:[%s1159 + $0x2c] sm:$0xf]
      %v1172 = vld [vmem:[%s1159 + $0x30] sm:$0xf]
      %v1173 = vld [vmem:[%s1159 + $0x34] sm:$0xf]
      %v1174 = vld [vmem:[%s1159 + $0x38] sm:$0xf]
      %v1175 = vld [vmem:[%s1159 + $0x3c] sm:$0xf]
      %v1176 = vld [vmem:[%s1159 + $0x40] sm:$0xf]
      %v1177 = vld [vmem:[%s1159 + $0x44] sm:$0xf]
      %v1178 = vld [vmem:[%s1159 + $0x48] sm:$0xf]
      %v1179 = vld [vmem:[%s1159 + $0x4c] sm:$0xf]
      %v1180 = vld [vmem:[%s1159 + $0x50] sm:$0xf]
      %v1181 = vld [vmem:[%s1159 + $0x54] sm:$0xf]
      %v1182 = vld [vmem:[%s1159 + $0x58] sm:$0xf]
      %v1183 = vld [vmem:[%s1159 + $0x5c] sm:$0xf]
      %v1184 = vld [vmem:[%s1159 + $0x60] sm:$0xf]
      %v1185 = vld [vmem:[%s1159 + $0x64] sm:$0xf]
      %v1186 = vld [vmem:[%s1159 + $0x68] sm:$0xf]
      %v1187 = vld [vmem:[%s1159 + $0x6c] sm:$0xf]
      %v1188 = vld [vmem:[%s1159 + $0x70] sm:$0xf]
      %v1189 = vld [vmem:[%s1159 + $0x74] sm:$0xf]
      %v1190 = vld [vmem:[%s1159 + $0x78] sm:$0xf]
      %v1191 = vld [vmem:[%s1159 + $0x7c] sm:$0xf]
      %v1224 = vunpack.c.l.b16 %v1160
      %v1225 = vunpack.c.l.b16 %v1161
      %v1226 = vunpack.c.l.b16 %v1162
      %v1227 = vunpack.c.l.b16 %v1163
      %v1228 = vunpack.c.l.b16 %v1164
      %v1229 = vunpack.c.l.b16 %v1165
      %v1230 = vunpack.c.l.b16 %v1166
      %v1231 = vunpack.c.l.b16 %v1167
      %v1232 = vunpack.c.l.b16 %v1168
      %v1233 = vunpack.c.l.b16 %v1169
      %v1234 = vunpack.c.l.b16 %v1170
      %v1235 = vunpack.c.l.b16 %v1171
      %v1236 = vunpack.c.l.b16 %v1172
      %v1237 = vunpack.c.l.b16 %v1173
      %v1238 = vunpack.c.l.b16 %v1174
      %v1239 = vunpack.c.l.b16 %v1175
      %v1240 = vunpack.c.l.b16 %v1176
      %v1241 = vunpack.c.l.b16 %v1177
      %v1242 = vunpack.c.l.b16 %v1178
      %v1243 = vunpack.c.l.b16 %v1179
      %v1244 = vunpack.c.l.b16 %v1180
      %v1245 = vunpack.c.l.b16 %v1181
      %v1246 = vunpack.c.l.b16 %v1182
      %v1247 = vunpack.c.l.b16 %v1183
      %v1248 = vunpack.c.l.b16 %v1184
      %v1249 = vunpack.c.l.b16 %v1185
      %v1250 = vunpack.c.l.b16 %v1186
      %v1251 = vunpack.c.l.b16 %v1187
      %v1252 = vunpack.c.l.b16 %v1188
      %v1253 = vunpack.c.l.b16 %v1189
      %v1254 = vunpack.c.l.b16 %v1190
      %v1255 = vunpack.c.l.b16 %v1191
      %v1256 = vpack.c.b16 %v1225, %v1224
      %v1257 = vpack.c.b16 %v1227, %v1226
      %v1258 = vpack.c.b16 %v1229, %v1228
      %v1259 = vpack.c.b16 %v1231, %v1230
      %v1260 = vpack.c.b16 %v1233, %v1232
      %v1261 = vpack.c.b16 %v1235, %v1234
      %v1262 = vpack.c.b16 %v1237, %v1236
      %v1263 = vpack.c.b16 %v1239, %v1238
      %v1264 = vpack.c.b16 %v1241, %v1240
      %v1265 = vpack.c.b16 %v1243, %v1242
      %v1266 = vpack.c.b16 %v1245, %v1244
      %v1267 = vpack.c.b16 %v1247, %v1246
      %v1268 = vpack.c.b16 %v1249, %v1248
      %v1269 = vpack.c.b16 %v1251, %v1250
      %v1270 = vpack.c.b16 %v1253, %v1252
      %v1271 = vpack.c.b16 %v1255, %v1254
      %1288 = vmatprep.subr.bf16.mxu0 0
      %1289 = vmatpush1.bf16.msra.mxu0 %v1263
      %1290 = vmatprep.subr.bf16.mxu0 0
      %1291 = vmatpush1.bf16.msra.mxu0 %v1262
      %1292 = vmatprep.subr.bf16.mxu0 0
      %1293 = vmatpush1.bf16.msra.mxu0 %v1261
      %1294 = vmatprep.subr.bf16.mxu0 0
      %1295 = vmatpush1.bf16.msra.mxu0 %v1260
      %1296 = vmatprep.subr.bf16.mxu0 0
      %1297 = vmatpush1.bf16.msra.mxu0 %v1259
      %1298 = vmatprep.subr.bf16.mxu0 0
      %1299 = vmatpush1.bf16.msra.mxu0 %v1258
      %1300 = vmatprep.subr.bf16.mxu0 0
      %1301 = vmatpush1.bf16.msra.mxu0 %v1257
      %1302 = vmatprep.subr.bf16.mxu0 0
      %1303 = vmatpush1.bf16.msra.mxu0 %v1256
      %1304 = vmatprep.subr.bf16.mxu0 0
      %1305 = vmatpush2.bf16.msra.mxu0 %v1271
      %1306 = vmatprep.subr.bf16.mxu0 0
      %1307 = vmatpush2.bf16.msra.mxu0 %v1270
      %1308 = vmatprep.subr.bf16.mxu0 0
      %1309 = vmatpush2.bf16.msra.mxu0 %v1269
      %1310 = vmatprep.subr.bf16.mxu0 0
      %1311 = vmatpush2.bf16.msra.mxu0 %v1268
      %1312 = vmatprep.subr.bf16.mxu0 0
      %1313 = vmatpush2.bf16.msra.mxu0 %v1267
      %1314 = vmatprep.subr.bf16.mxu0 0
      %1315 = vmatpush2.bf16.msra.mxu0 %v1266
      %1316 = vmatprep.subr.bf16.mxu0 0
      %1317 = vmatpush2.bf16.msra.mxu0 %v1265
      %1318 = vmatprep.subr.bf16.mxu0 0
      %1319 = vmatpush2.bf16.msra.mxu0 %v1264
      %1320 = vmatprep.mubr.bf16.mxu0 %v309
      %1321 = vmatmul.mubr.bf16.gmra.mxu0 %v308
      %v1322 = vpop.f32.mrf.mxu0
      %v1323 = vadd.f32 0.0, %v1322
      %v1324 = vpop.f32.mrf.mxu0
      %v1325 = vpop.f32.mrf.mxu0
      %v1326 = vpop.f32.mrf.mxu0
      %1327 = vdwg.mxu0
      %1328 = vst [vmem:[#allocation2 + $0x28] sm:$0xff] %v1323
      %s1329 = scalar_lea.vmem %s218, 768
      %v1330 = vld [vmem:[%s1329] sm:$0xf]
      %v1331 = vld [vmem:[%s1329 + $0x4] sm:$0xf]
      %v1332 = vld [vmem:[%s1329 + $0x8] sm:$0xf]
      %v1333 = vld [vmem:[%s1329 + $0xc] sm:$0xf]
      %v1334 = vld [vmem:[%s1329 + $0x10] sm:$0xf]
      %v1335 = vld [vmem:[%s1329 + $0x14] sm:$0xf]
      %v1336 = vld [vmem:[%s1329 + $0x18] sm:$0xf]
      %v1337 = vld [vmem:[%s1329 + $0x1c] sm:$0xf]
      %v1338 = vld [vmem:[%s1329 + $0x20] sm:$0xf]
      %v1339 = vld [vmem:[%s1329 + $0x24] sm:$0xf]
      %v1340 = vld [vmem:[%s1329 + $0x28] sm:$0xf]
      %v1341 = vld [vmem:[%s1329 + $0x2c] sm:$0xf]
      %v1342 = vld [vmem:[%s1329 + $0x30] sm:$0xf]
      %v1343 = vld [vmem:[%s1329 + $0x34] sm:$0xf]
      %v1344 = vld [vmem:[%s1329 + $0x38] sm:$0xf]
      %v1345 = vld [vmem:[%s1329 + $0x3c] sm:$0xf]
      %v1346 = vld [vmem:[%s1329 + $0x40] sm:$0xf]
      %v1347 = vld [vmem:[%s1329 + $0x44] sm:$0xf]
      %v1348 = vld [vmem:[%s1329 + $0x48] sm:$0xf]
      %v1349 = vld [vmem:[%s1329 + $0x4c] sm:$0xf]
      %v1350 = vld [vmem:[%s1329 + $0x50] sm:$0xf]
      %v1351 = vld [vmem:[%s1329 + $0x54] sm:$0xf]
      %v1352 = vld [vmem:[%s1329 + $0x58] sm:$0xf]
      %v1353 = vld [vmem:[%s1329 + $0x5c] sm:$0xf]
      %v1354 = vld [vmem:[%s1329 + $0x60] sm:$0xf]
      %v1355 = vld [vmem:[%s1329 + $0x64] sm:$0xf]
      %v1356 = vld [vmem:[%s1329 + $0x68] sm:$0xf]
      %v1357 = vld [vmem:[%s1329 + $0x6c] sm:$0xf]
      %v1358 = vld [vmem:[%s1329 + $0x70] sm:$0xf]
      %v1359 = vld [vmem:[%s1329 + $0x74] sm:$0xf]
      %v1360 = vld [vmem:[%s1329 + $0x78] sm:$0xf]
      %v1361 = vld [vmem:[%s1329 + $0x7c] sm:$0xf]
      %v1394 = vunpack.c.l.b16 %v1330
      %v1395 = vunpack.c.l.b16 %v1331
      %v1396 = vunpack.c.l.b16 %v1332
      %v1397 = vunpack.c.l.b16 %v1333
      %v1398 = vunpack.c.l.b16 %v1334
      %v1399 = vunpack.c.l.b16 %v1335
      %v1400 = vunpack.c.l.b16 %v1336
      %v1401 = vunpack.c.l.b16 %v1337
      %v1402 = vunpack.c.l.b16 %v1338
      %v1403 = vunpack.c.l.b16 %v1339
      %v1404 = vunpack.c.l.b16 %v1340
      %v1405 = vunpack.c.l.b16 %v1341
      %v1406 = vunpack.c.l.b16 %v1342
      %v1407 = vunpack.c.l.b16 %v1343
      %v1408 = vunpack.c.l.b16 %v1344
      %v1409 = vunpack.c.l.b16 %v1345
      %v1410 = vunpack.c.l.b16 %v1346
      %v1411 = vunpack.c.l.b16 %v1347
      %v1412 = vunpack.c.l.b16 %v1348
      %v1413 = vunpack.c.l.b16 %v1349
      %v1414 = vunpack.c.l.b16 %v1350
      %v1415 = vunpack.c.l.b16 %v1351
      %v1416 = vunpack.c.l.b16 %v1352
      %v1417 = vunpack.c.l.b16 %v1353
      %v1418 = vunpack.c.l.b16 %v1354
      %v1419 = vunpack.c.l.b16 %v1355
      %v1420 = vunpack.c.l.b16 %v1356
      %v1421 = vunpack.c.l.b16 %v1357
      %v1422 = vunpack.c.l.b16 %v1358
      %v1423 = vunpack.c.l.b16 %v1359
      %v1424 = vunpack.c.l.b16 %v1360
      %v1425 = vunpack.c.l.b16 %v1361
      %v1426 = vpack.c.b16 %v1395, %v1394
      %v1427 = vpack.c.b16 %v1397, %v1396
      %v1428 = vpack.c.b16 %v1399, %v1398
      %v1429 = vpack.c.b16 %v1401, %v1400
      %v1430 = vpack.c.b16 %v1403, %v1402
      %v1431 = vpack.c.b16 %v1405, %v1404
      %v1432 = vpack.c.b16 %v1407, %v1406
      %v1433 = vpack.c.b16 %v1409, %v1408
      %v1434 = vpack.c.b16 %v1411, %v1410
      %v1435 = vpack.c.b16 %v1413, %v1412
      %v1436 = vpack.c.b16 %v1415, %v1414
      %v1437 = vpack.c.b16 %v1417, %v1416
      %v1438 = vpack.c.b16 %v1419, %v1418
      %v1439 = vpack.c.b16 %v1421, %v1420
      %v1440 = vpack.c.b16 %v1423, %v1422
      %v1441 = vpack.c.b16 %v1425, %v1424
      %1458 = vmatprep.subr.bf16.mxu0 0
      %1459 = vmatpush1.bf16.msra.mxu0 %v1433
      %1460 = vmatprep.subr.bf16.mxu0 0
      %1461 = vmatpush1.bf16.msra.mxu0 %v1432
      %1462 = vmatprep.subr.bf16.mxu0 0
      %1463 = vmatpush1.bf16.msra.mxu0 %v1431
      %1464 = vmatprep.subr.bf16.mxu0 0
      %1465 = vmatpush1.bf16.msra.mxu0 %v1430
      %1466 = vmatprep.subr.bf16.mxu0 0
      %1467 = vmatpush1.bf16.msra.mxu0 %v1429
      %1468 = vmatprep.subr.bf16.mxu0 0
      %1469 = vmatpush1.bf16.msra.mxu0 %v1428
      %1470 = vmatprep.subr.bf16.mxu0 0
      %1471 = vmatpush1.bf16.msra.mxu0 %v1427
      %1472 = vmatprep.subr.bf16.mxu0 0
      %1473 = vmatpush1.bf16.msra.mxu0 %v1426
      %1474 = vmatprep.subr.bf16.mxu0 0
      %1475 = vmatpush2.bf16.msra.mxu0 %v1441
      %1476 = vmatprep.subr.bf16.mxu0 0
      %1477 = vmatpush2.bf16.msra.mxu0 %v1440
      %1478 = vmatprep.subr.bf16.mxu0 0
      %1479 = vmatpush2.bf16.msra.mxu0 %v1439
      %1480 = vmatprep.subr.bf16.mxu0 0
      %1481 = vmatpush2.bf16.msra.mxu0 %v1438
      %1482 = vmatprep.subr.bf16.mxu0 0
      %1483 = vmatpush2.bf16.msra.mxu0 %v1437
      %1484 = vmatprep.subr.bf16.mxu0 0
      %1485 = vmatpush2.bf16.msra.mxu0 %v1436
      %1486 = vmatprep.subr.bf16.mxu0 0
      %1487 = vmatpush2.bf16.msra.mxu0 %v1435
      %1488 = vmatprep.subr.bf16.mxu0 0
      %1489 = vmatpush2.bf16.msra.mxu0 %v1434
      %1490 = vmatprep.mubr.bf16.mxu0 %v309
      %1491 = vmatmul.mubr.bf16.gmra.mxu0 %v308
      %v1492 = vpop.f32.mrf.mxu0
      %v1493 = vadd.f32 0.0, %v1492
      %v1494 = vpop.f32.mrf.mxu0
      %v1495 = vpop.f32.mrf.mxu0
      %v1496 = vpop.f32.mrf.mxu0
      %1497 = vdwg.mxu0
      %1498 = vst [vmem:[#allocation2 + $0x30] sm:$0xff] %v1493
      %s1499 = scalar_lea.vmem %s218, 896
      %v1500 = vld [vmem:[%s1499] sm:$0xf]
      %v1501 = vld [vmem:[%s1499 + $0x4] sm:$0xf]
      %v1502 = vld [vmem:[%s1499 + $0x8] sm:$0xf]
      %v1503 = vld [vmem:[%s1499 + $0xc] sm:$0xf]
      %v1504 = vld [vmem:[%s1499 + $0x10] sm:$0xf]
      %v1505 = vld [vmem:[%s1499 + $0x14] sm:$0xf]
      %v1506 = vld [vmem:[%s1499 + $0x18] sm:$0xf]
      %v1507 = vld [vmem:[%s1499 + $0x1c] sm:$0xf]
      %v1508 = vld [vmem:[%s1499 + $0x20] sm:$0xf]
      %v1509 = vld [vmem:[%s1499 + $0x24] sm:$0xf]
      %v1510 = vld [vmem:[%s1499 + $0x28] sm:$0xf]
      %v1511 = vld [vmem:[%s1499 + $0x2c] sm:$0xf]
      %v1512 = vld [vmem:[%s1499 + $0x30] sm:$0xf]
      %v1513 = vld [vmem:[%s1499 + $0x34] sm:$0xf]
      %v1514 = vld [vmem:[%s1499 + $0x38] sm:$0xf]
      %v1515 = vld [vmem:[%s1499 + $0x3c] sm:$0xf]
      %v1516 = vld [vmem:[%s1499 + $0x40] sm:$0xf]
      %v1517 = vld [vmem:[%s1499 + $0x44] sm:$0xf]
      %v1518 = vld [vmem:[%s1499 + $0x48] sm:$0xf]
      %v1519 = vld [vmem:[%s1499 + $0x4c] sm:$0xf]
      %v1520 = vld [vmem:[%s1499 + $0x50] sm:$0xf]
      %v1521 = vld [vmem:[%s1499 + $0x54] sm:$0xf]
      %v1522 = vld [vmem:[%s1499 + $0x58] sm:$0xf]
      %v1523 = vld [vmem:[%s1499 + $0x5c] sm:$0xf]
      %v1524 = vld [vmem:[%s1499 + $0x60] sm:$0xf]
      %v1525 = vld [vmem:[%s1499 + $0x64] sm:$0xf]
      %v1526 = vld [vmem:[%s1499 + $0x68] sm:$0xf]
      %v1527 = vld [vmem:[%s1499 + $0x6c] sm:$0xf]
      %v1528 = vld [vmem:[%s1499 + $0x70] sm:$0xf]
      %v1529 = vld [vmem:[%s1499 + $0x74] sm:$0xf]
      %v1530 = vld [vmem:[%s1499 + $0x78] sm:$0xf]
      %v1531 = vld [vmem:[%s1499 + $0x7c] sm:$0xf]
      %v1564 = vunpack.c.l.b16 %v1500
      %v1565 = vunpack.c.l.b16 %v1501
      %v1566 = vunpack.c.l.b16 %v1502
      %v1567 = vunpack.c.l.b16 %v1503
      %v1568 = vunpack.c.l.b16 %v1504
      %v1569 = vunpack.c.l.b16 %v1505
      %v1570 = vunpack.c.l.b16 %v1506
      %v1571 = vunpack.c.l.b16 %v1507
      %v1572 = vunpack.c.l.b16 %v1508
      %v1573 = vunpack.c.l.b16 %v1509
      %v1574 = vunpack.c.l.b16 %v1510
      %v1575 = vunpack.c.l.b16 %v1511
      %v1576 = vunpack.c.l.b16 %v1512
      %v1577 = vunpack.c.l.b16 %v1513
      %v1578 = vunpack.c.l.b16 %v1514
      %v1579 = vunpack.c.l.b16 %v1515
      %v1580 = vunpack.c.l.b16 %v1516
      %v1581 = vunpack.c.l.b16 %v1517
      %v1582 = vunpack.c.l.b16 %v1518
      %v1583 = vunpack.c.l.b16 %v1519
      %v1584 = vunpack.c.l.b16 %v1520
      %v1585 = vunpack.c.l.b16 %v1521
      %v1586 = vunpack.c.l.b16 %v1522
      %v1587 = vunpack.c.l.b16 %v1523
      %v1588 = vunpack.c.l.b16 %v1524
      %v1589 = vunpack.c.l.b16 %v1525
      %v1590 = vunpack.c.l.b16 %v1526
      %v1591 = vunpack.c.l.b16 %v1527
      %v1592 = vunpack.c.l.b16 %v1528
      %v1593 = vunpack.c.l.b16 %v1529
      %v1594 = vunpack.c.l.b16 %v1530
      %v1595 = vunpack.c.l.b16 %v1531
      %v1596 = vpack.c.b16 %v1565, %v1564
      %v1597 = vpack.c.b16 %v1567, %v1566
      %v1598 = vpack.c.b16 %v1569, %v1568
      %v1599 = vpack.c.b16 %v1571, %v1570
      %v1600 = vpack.c.b16 %v1573, %v1572
      %v1601 = vpack.c.b16 %v1575, %v1574
      %v1602 = vpack.c.b16 %v1577, %v1576
      %v1603 = vpack.c.b16 %v1579, %v1578
      %v1604 = vpack.c.b16 %v1581, %v1580
      %v1605 = vpack.c.b16 %v1583, %v1582
      %v1606 = vpack.c.b16 %v1585, %v1584
      %v1607 = vpack.c.b16 %v1587, %v1586
      %v1608 = vpack.c.b16 %v1589, %v1588
      %v1609 = vpack.c.b16 %v1591, %v1590
      %v1610 = vpack.c.b16 %v1593, %v1592
      %v1611 = vpack.c.b16 %v1595, %v1594
      %1628 = vmatprep.subr.bf16.mxu0 0
      %1629 = vmatpush1.bf16.msra.mxu0 %v1603
      %1630 = vmatprep.subr.bf16.mxu0 0
      %1631 = vmatpush1.bf16.msra.mxu0 %v1602
      %1632 = vmatprep.subr.bf16.mxu0 0
      %1633 = vmatpush1.bf16.msra.mxu0 %v1601
      %1634 = vmatprep.subr.bf16.mxu0 0
      %1635 = vmatpush1.bf16.msra.mxu0 %v1600
      %1636 = vmatprep.subr.bf16.mxu0 0
      %1637 = vmatpush1.bf16.msra.mxu0 %v1599
      %1638 = vmatprep.subr.bf16.mxu0 0
      %1639 = vmatpush1.bf16.msra.mxu0 %v1598
      %1640 = vmatprep.subr.bf16.mxu0 0
      %1641 = vmatpush1.bf16.msra.mxu0 %v1597
      %1642 = vmatprep.subr.bf16.mxu0 0
      %1643 = vmatpush1.bf16.msra.mxu0 %v1596
      %1644 = vmatprep.subr.bf16.mxu0 0
      %1645 = vmatpush2.bf16.msra.mxu0 %v1611
      %1646 = vmatprep.subr.bf16.mxu0 0
      %1647 = vmatpush2.bf16.msra.mxu0 %v1610
      %1648 = vmatprep.subr.bf16.mxu0 0
      %1649 = vmatpush2.bf16.msra.mxu0 %v1609
      %1650 = vmatprep.subr.bf16.mxu0 0
      %1651 = vmatpush2.bf16.msra.mxu0 %v1608
      %1652 = vmatprep.subr.bf16.mxu0 0
      %1653 = vmatpush2.bf16.msra.mxu0 %v1607
      %1654 = vmatprep.subr.bf16.mxu0 0
      %1655 = vmatpush2.bf16.msra.mxu0 %v1606
      %1656 = vmatprep.subr.bf16.mxu0 0
      %1657 = vmatpush2.bf16.msra.mxu0 %v1605
      %1658 = vmatprep.subr.bf16.mxu0 0
      %1659 = vmatpush2.bf16.msra.mxu0 %v1604
      %1660 = vmatprep.mubr.bf16.mxu0 %v309
      %1661 = vmatmul.mubr.bf16.gmra.mxu0 %v308
      %v1662 = vpop.f32.mrf.mxu0
      %v1663 = vadd.f32 0.0, %v1662
      %v1664 = vpop.f32.mrf.mxu0
      %v1665 = vpop.f32.mrf.mxu0
      %v1666 = vpop.f32.mrf.mxu0
      %1667 = vdwg.mxu0
      %1668 = vst [vmem:[#allocation2 + $0x38] sm:$0xff] %v1663
      %s1669 = scalar_lea.vmem %s218, 1024
      %v1670 = vld [vmem:[%s1669] sm:$0xf]
      %v1671 = vld [vmem:[%s1669 + $0x4] sm:$0xf]
      %v1672 = vld [vmem:[%s1669 + $0x8] sm:$0xf]
      %v1673 = vld [vmem:[%s1669 + $0xc] sm:$0xf]
      %v1674 = vld [vmem:[%s1669 + $0x10] sm:$0xf]
      %v1675 = vld [vmem:[%s1669 + $0x14] sm:$0xf]
      %v1676 = vld [vmem:[%s1669 + $0x18] sm:$0xf]
      %v1677 = vld [vmem:[%s1669 + $0x1c] sm:$0xf]
      %v1678 = vld [vmem:[%s1669 + $0x20] sm:$0xf]
      %v1679 = vld [vmem:[%s1669 + $0x24] sm:$0xf]
      %v1680 = vld [vmem:[%s1669 + $0x28] sm:$0xf]
      %v1681 = vld [vmem:[%s1669 + $0x2c] sm:$0xf]
      %v1682 = vld [vmem:[%s1669 + $0x30] sm:$0xf]
      %v1683 = vld [vmem:[%s1669 + $0x34] sm:$0xf]
      %v1684 = vld [vmem:[%s1669 + $0x38] sm:$0xf]
      %v1685 = vld [vmem:[%s1669 + $0x3c] sm:$0xf]
      %v1686 = vld [vmem:[%s1669 + $0x40] sm:$0xf]
      %v1687 = vld [vmem:[%s1669 + $0x44] sm:$0xf]
      %v1688 = vld [vmem:[%s1669 + $0x48] sm:$0xf]
      %v1689 = vld [vmem:[%s1669 + $0x4c] sm:$0xf]
      %v1690 = vld [vmem:[%s1669 + $0x50] sm:$0xf]
      %v1691 = vld [vmem:[%s1669 + $0x54] sm:$0xf]
      %v1692 = vld [vmem:[%s1669 + $0x58] sm:$0xf]
      %v1693 = vld [vmem:[%s1669 + $0x5c] sm:$0xf]
      %v1694 = vld [vmem:[%s1669 + $0x60] sm:$0xf]
      %v1695 = vld [vmem:[%s1669 + $0x64] sm:$0xf]
      %v1696 = vld [vmem:[%s1669 + $0x68] sm:$0xf]
      %v1697 = vld [vmem:[%s1669 + $0x6c] sm:$0xf]
      %v1698 = vld [vmem:[%s1669 + $0x70] sm:$0xf]
      %v1699 = vld [vmem:[%s1669 + $0x74] sm:$0xf]
      %v1700 = vld [vmem:[%s1669 + $0x78] sm:$0xf]
      %v1701 = vld [vmem:[%s1669 + $0x7c] sm:$0xf]
      %v1734 = vunpack.c.l.b16 %v1670
      %v1735 = vunpack.c.l.b16 %v1671
      %v1736 = vunpack.c.l.b16 %v1672
      %v1737 = vunpack.c.l.b16 %v1673
      %v1738 = vunpack.c.l.b16 %v1674
      %v1739 = vunpack.c.l.b16 %v1675
      %v1740 = vunpack.c.l.b16 %v1676
      %v1741 = vunpack.c.l.b16 %v1677
      %v1742 = vunpack.c.l.b16 %v1678
      %v1743 = vunpack.c.l.b16 %v1679
      %v1744 = vunpack.c.l.b16 %v1680
      %v1745 = vunpack.c.l.b16 %v1681
      %v1746 = vunpack.c.l.b16 %v1682
      %v1747 = vunpack.c.l.b16 %v1683
      %v1748 = vunpack.c.l.b16 %v1684
      %v1749 = vunpack.c.l.b16 %v1685
      %v1750 = vunpack.c.l.b16 %v1686
      %v1751 = vunpack.c.l.b16 %v1687
      %v1752 = vunpack.c.l.b16 %v1688
      %v1753 = vunpack.c.l.b16 %v1689
      %v1754 = vunpack.c.l.b16 %v1690
      %v1755 = vunpack.c.l.b16 %v1691
      %v1756 = vunpack.c.l.b16 %v1692
      %v1757 = vunpack.c.l.b16 %v1693
      %v1758 = vunpack.c.l.b16 %v1694
      %v1759 = vunpack.c.l.b16 %v1695
      %v1760 = vunpack.c.l.b16 %v1696
      %v1761 = vunpack.c.l.b16 %v1697
      %v1762 = vunpack.c.l.b16 %v1698
      %v1763 = vunpack.c.l.b16 %v1699
      %v1764 = vunpack.c.l.b16 %v1700
      %v1765 = vunpack.c.l.b16 %v1701
      %v1766 = vpack.c.b16 %v1735, %v1734
      %v1767 = vpack.c.b16 %v1737, %v1736
      %v1768 = vpack.c.b16 %v1739, %v1738
      %v1769 = vpack.c.b16 %v1741, %v1740
      %v1770 = vpack.c.b16 %v1743, %v1742
      %v1771 = vpack.c.b16 %v1745, %v1744
      %v1772 = vpack.c.b16 %v1747, %v1746
      %v1773 = vpack.c.b16 %v1749, %v1748
      %v1774 = vpack.c.b16 %v1751, %v1750
      %v1775 = vpack.c.b16 %v1753, %v1752
      %v1776 = vpack.c.b16 %v1755, %v1754
      %v1777 = vpack.c.b16 %v1757, %v1756
      %v1778 = vpack.c.b16 %v1759, %v1758
      %v1779 = vpack.c.b16 %v1761, %v1760
      %v1780 = vpack.c.b16 %v1763, %v1762
      %v1781 = vpack.c.b16 %v1765, %v1764
      %1798 = vmatprep.subr.bf16.mxu0 0
      %1799 = vmatpush1.bf16.msra.mxu0 %v1773
      %1800 = vmatprep.subr.bf16.mxu0 0
      %1801 = vmatpush1.bf16.msra.mxu0 %v1772
      %1802 = vmatprep.subr.bf16.mxu0 0
      %1803 = vmatpush1.bf16.msra.mxu0 %v1771
      %1804 = vmatprep.subr.bf16.mxu0 0
      %1805 = vmatpush1.bf16.msra.mxu0 %v1770
      %1806 = vmatprep.subr.bf16.mxu0 0
      %1807 = vmatpush1.bf16.msra.mxu0 %v1769
      %1808 = vmatprep.subr.bf16.mxu0 0
      %1809 = vmatpush1.bf16.msra.mxu0 %v1768
      %1810 = vmatprep.subr.bf16.mxu0 0
      %1811 = vmatpush1.bf16.msra.mxu0 %v1767
      %1812 = vmatprep.subr.bf16.mxu0 0
      %1813 = vmatpush1.bf16.msra.mxu0 %v1766
      %1814 = vmatprep.subr.bf16.mxu0 0
      %1815 = vmatpush2.bf16.msra.mxu0 %v1781
      %1816 = vmatprep.subr.bf16.mxu0 0
      %1817 = vmatpush2.bf16.msra.mxu0 %v1780
      %1818 = vmatprep.subr.bf16.mxu0 0
      %1819 = vmatpush2.bf16.msra.mxu0 %v1779
      %1820 = vmatprep.subr.bf16.mxu0 0
      %1821 = vmatpush2.bf16.msra.mxu0 %v1778
      %1822 = vmatprep.subr.bf16.mxu0 0
      %1823 = vmatpush2.bf16.msra.mxu0 %v1777
      %1824 = vmatprep.subr.bf16.mxu0 0
      %1825 = vmatpush2.bf16.msra.mxu0 %v1776
      %1826 = vmatprep.subr.bf16.mxu0 0
      %1827 = vmatpush2.bf16.msra.mxu0 %v1775
      %1828 = vmatprep.subr.bf16.mxu0 0
      %1829 = vmatpush2.bf16.msra.mxu0 %v1774
      %1830 = vmatprep.mubr.bf16.mxu0 %v309
      %1831 = vmatmul.mubr.bf16.gmra.mxu0 %v308
      %v1832 = vpop.f32.mrf.mxu0
      %v1833 = vadd.f32 0.0, %v1832
      %v1834 = vpop.f32.mrf.mxu0
      %v1835 = vpop.f32.mrf.mxu0
      %v1836 = vpop.f32.mrf.mxu0
      %1837 = vdwg.mxu0
      %1838 = vst [vmem:[#allocation2 + $0x40] sm:$0xff] %v1833
      %s1839 = scalar_lea.vmem %s218, 1152
      %v1840 = vld [vmem:[%s1839] sm:$0xf]
      %v1841 = vld [vmem:[%s1839 + $0x4] sm:$0xf]
      %v1842 = vld [vmem:[%s1839 + $0x8] sm:$0xf]
      %v1843 = vld [vmem:[%s1839 + $0xc] sm:$0xf]
      %v1844 = vld [vmem:[%s1839 + $0x10] sm:$0xf]
      %v1845 = vld [vmem:[%s1839 + $0x14] sm:$0xf]
      %v1846 = vld [vmem:[%s1839 + $0x18] sm:$0xf]
      %v1847 = vld [vmem:[%s1839 + $0x1c] sm:$0xf]
      %v1848 = vld [vmem:[%s1839 + $0x20] sm:$0xf]
      %v1849 = vld [vmem:[%s1839 + $0x24] sm:$0xf]
      %v1850 = vld [vmem:[%s1839 + $0x28] sm:$0xf]
      %v1851 = vld [vmem:[%s1839 + $0x2c] sm:$0xf]
      %v1852 = vld [vmem:[%s1839 + $0x30] sm:$0xf]
      %v1853 = vld [vmem:[%s1839 + $0x34] sm:$0xf]
      %v1854 = vld [vmem:[%s1839 + $0x38] sm:$0xf]
      %v1855 = vld [vmem:[%s1839 + $0x3c] sm:$0xf]
      %v1856 = vld [vmem:[%s1839 + $0x40] sm:$0xf]
      %v1857 = vld [vmem:[%s1839 + $0x44] sm:$0xf]
      %v1858 = vld [vmem:[%s1839 + $0x48] sm:$0xf]
      %v1859 = vld [vmem:[%s1839 + $0x4c] sm:$0xf]
      %v1860 = vld [vmem:[%s1839 + $0x50] sm:$0xf]
      %v1861 = vld [vmem:[%s1839 + $0x54] sm:$0xf]
      %v1862 = vld [vmem:[%s1839 + $0x58] sm:$0xf]
      %v1863 = vld [vmem:[%s1839 + $0x5c] sm:$0xf]
      %v1864 = vld [vmem:[%s1839 + $0x60] sm:$0xf]
      %v1865 = vld [vmem:[%s1839 + $0x64] sm:$0xf]
      %v1866 = vld [vmem:[%s1839 + $0x68] sm:$0xf]
      %v1867 = vld [vmem:[%s1839 + $0x6c] sm:$0xf]
      %v1868 = vld [vmem:[%s1839 + $0x70] sm:$0xf]
      %v1869 = vld [vmem:[%s1839 + $0x74] sm:$0xf]
      %v1870 = vld [vmem:[%s1839 + $0x78] sm:$0xf]
      %v1871 = vld [vmem:[%s1839 + $0x7c] sm:$0xf]
      %v1904 = vunpack.c.l.b16 %v1840
      %v1905 = vunpack.c.l.b16 %v1841
      %v1906 = vunpack.c.l.b16 %v1842
      %v1907 = vunpack.c.l.b16 %v1843
      %v1908 = vunpack.c.l.b16 %v1844
      %v1909 = vunpack.c.l.b16 %v1845
      %v1910 = vunpack.c.l.b16 %v1846
      %v1911 = vunpack.c.l.b16 %v1847
      %v1912 = vunpack.c.l.b16 %v1848
      %v1913 = vunpack.c.l.b16 %v1849
      %v1914 = vunpack.c.l.b16 %v1850
      %v1915 = vunpack.c.l.b16 %v1851
      %v1916 = vunpack.c.l.b16 %v1852
      %v1917 = vunpack.c.l.b16 %v1853
      %v1918 = vunpack.c.l.b16 %v1854
      %v1919 = vunpack.c.l.b16 %v1855
      %v1920 = vunpack.c.l.b16 %v1856
      %v1921 = vunpack.c.l.b16 %v1857
      %v1922 = vunpack.c.l.b16 %v1858
      %v1923 = vunpack.c.l.b16 %v1859
      %v1924 = vunpack.c.l.b16 %v1860
      %v1925 = vunpack.c.l.b16 %v1861
      %v1926 = vunpack.c.l.b16 %v1862
      %v1927 = vunpack.c.l.b16 %v1863
      %v1928 = vunpack.c.l.b16 %v1864
      %v1929 = vunpack.c.l.b16 %v1865
      %v1930 = vunpack.c.l.b16 %v1866
      %v1931 = vunpack.c.l.b16 %v1867
      %v1932 = vunpack.c.l.b16 %v1868
      %v1933 = vunpack.c.l.b16 %v1869
      %v1934 = vunpack.c.l.b16 %v1870
      %v1935 = vunpack.c.l.b16 %v1871
      %v1936 = vpack.c.b16 %v1905, %v1904
      %v1937 = vpack.c.b16 %v1907, %v1906
      %v1938 = vpack.c.b16 %v1909, %v1908
      %v1939 = vpack.c.b16 %v1911, %v1910
      %v1940 = vpack.c.b16 %v1913, %v1912
      %v1941 = vpack.c.b16 %v1915, %v1914
      %v1942 = vpack.c.b16 %v1917, %v1916
      %v1943 = vpack.c.b16 %v1919, %v1918
      %v1944 = vpack.c.b16 %v1921, %v1920
      %v1945 = vpack.c.b16 %v1923, %v1922
      %v1946 = vpack.c.b16 %v1925, %v1924
      %v1947 = vpack.c.b16 %v1927, %v1926
      %v1948 = vpack.c.b16 %v1929, %v1928
      %v1949 = vpack.c.b16 %v1931, %v1930
      %v1950 = vpack.c.b16 %v1933, %v1932
      %v1951 = vpack.c.b16 %v1935, %v1934
      %1968 = vmatprep.subr.bf16.mxu0 0
      %1969 = vmatpush1.bf16.msra.mxu0 %v1943
      %1970 = vmatprep.subr.bf16.mxu0 0
      %1971 = vmatpush1.bf16.msra.mxu0 %v1942
      %1972 = vmatprep.subr.bf16.mxu0 0
      %1973 = vmatpush1.bf16.msra.mxu0 %v1941
      %1974 = vmatprep.subr.bf16.mxu0 0
      %1975 = vmatpush1.bf16.msra.mxu0 %v1940
      %1976 = vmatprep.subr.bf16.mxu0 0
      %1977 = vmatpush1.bf16.msra.mxu0 %v1939
      %1978 = vmatprep.subr.bf16.mxu0 0
      %1979 = vmatpush1.bf16.msra.mxu0 %v1938
      %1980 = vmatprep.subr.bf16.mxu0 0
      %1981 = vmatpush1.bf16.msra.mxu0 %v1937
      %1982 = vmatprep.subr.bf16.mxu0 0
      %1983 = vmatpush1.bf16.msra.mxu0 %v1936
      %1984 = vmatprep.subr.bf16.mxu0 0
      %1985 = vmatpush2.bf16.msra.mxu0 %v1951
      %1986 = vmatprep.subr.bf16.mxu0 0
      %1987 = vmatpush2.bf16.msra.mxu0 %v1950
      %1988 = vmatprep.subr.bf16.mxu0 0
      %1989 = vmatpush2.bf16.msra.mxu0 %v1949
      %1990 = vmatprep.subr.bf16.mxu0 0
      %1991 = vmatpush2.bf16.msra.mxu0 %v1948
      %1992 = vmatprep.subr.bf16.mxu0 0
      %1993 = vmatpush2.bf16.msra.mxu0 %v1947
      %1994 = vmatprep.subr.bf16.mxu0 0
      %1995 = vmatpush2.bf16.msra.mxu0 %v1946
      %1996 = vmatprep.subr.bf16.mxu0 0
      %1997 = vmatpush2.bf16.msra.mxu0 %v1945
      %1998 = vmatprep.subr.bf16.mxu0 0
      %1999 = vmatpush2.bf16.msra.mxu0 %v1944
      %2000 = vmatprep.mubr.bf16.mxu0 %v309
      %2001 = vmatmul.mubr.bf16.gmra.mxu0 %v308
      %v2002 = vpop.f32.mrf.mxu0
      %v2003 = vadd.f32 0.0, %v2002
      %v2004 = vpop.f32.mrf.mxu0
      %v2005 = vpop.f32.mrf.mxu0
      %v2006 = vpop.f32.mrf.mxu0
      %2007 = vdwg.mxu0
      %2008 = vst [vmem:[#allocation2 + $0x48] sm:$0xff] %v2003
      %s2009 = scalar_lea.vmem %s218, 1280
      %v2010 = vld [vmem:[%s2009] sm:$0xf]
      %v2011 = vld [vmem:[%s2009 + $0x4] sm:$0xf]
      %v2012 = vld [vmem:[%s2009 + $0x8] sm:$0xf]
      %v2013 = vld [vmem:[%s2009 + $0xc] sm:$0xf]
      %v2014 = vld [vmem:[%s2009 + $0x10] sm:$0xf]
      %v2015 = vld [vmem:[%s2009 + $0x14] sm:$0xf]
      %v2016 = vld [vmem:[%s2009 + $0x18] sm:$0xf]
      %v2017 = vld [vmem:[%s2009 + $0x1c] sm:$0xf]
      %v2018 = vld [vmem:[%s2009 + $0x20] sm:$0xf]
      %v2019 = vld [vmem:[%s2009 + $0x24] sm:$0xf]
      %v2020 = vld [vmem:[%s2009 + $0x28] sm:$0xf]
      %v2021 = vld [vmem:[%s2009 + $0x2c] sm:$0xf]
      %v2022 = vld [vmem:[%s2009 + $0x30] sm:$0xf]
      %v2023 = vld [vmem:[%s2009 + $0x34] sm:$0xf]
      %v2024 = vld [vmem:[%s2009 + $0x38] sm:$0xf]
      %v2025 = vld [vmem:[%s2009 + $0x3c] sm:$0xf]
      %v2026 = vld [vmem:[%s2009 + $0x40] sm:$0xf]
      %v2027 = vld [vmem:[%s2009 + $0x44] sm:$0xf]
      %v2028 = vld [vmem:[%s2009 + $0x48] sm:$0xf]
      %v2029 = vld [vmem:[%s2009 + $0x4c] sm:$0xf]
      %v2030 = vld [vmem:[%s2009 + $0x50] sm:$0xf]
      %v2031 = vld [vmem:[%s2009 + $0x54] sm:$0xf]
      %v2032 = vld [vmem:[%s2009 + $0x58] sm:$0xf]
      %v2033 = vld [vmem:[%s2009 + $0x5c] sm:$0xf]
      %v2034 = vld [vmem:[%s2009 + $0x60] sm:$0xf]
      %v2035 = vld [vmem:[%s2009 + $0x64] sm:$0xf]
      %v2036 = vld [vmem:[%s2009 + $0x68] sm:$0xf]
      %v2037 = vld [vmem:[%s2009 + $0x6c] sm:$0xf]
      %v2038 = vld [vmem:[%s2009 + $0x70] sm:$0xf]
      %v2039 = vld [vmem:[%s2009 + $0x74] sm:$0xf]
      %v2040 = vld [vmem:[%s2009 + $0x78] sm:$0xf]
      %v2041 = vld [vmem:[%s2009 + $0x7c] sm:$0xf]
      %v2074 = vunpack.c.l.b16 %v2010
      %v2075 = vunpack.c.l.b16 %v2011
      %v2076 = vunpack.c.l.b16 %v2012
      %v2077 = vunpack.c.l.b16 %v2013
      %v2078 = vunpack.c.l.b16 %v2014
      %v2079 = vunpack.c.l.b16 %v2015
      %v2080 = vunpack.c.l.b16 %v2016
      %v2081 = vunpack.c.l.b16 %v2017
      %v2082 = vunpack.c.l.b16 %v2018
      %v2083 = vunpack.c.l.b16 %v2019
      %v2084 = vunpack.c.l.b16 %v2020
      %v2085 = vunpack.c.l.b16 %v2021
      %v2086 = vunpack.c.l.b16 %v2022
      %v2087 = vunpack.c.l.b16 %v2023
      %v2088 = vunpack.c.l.b16 %v2024
      %v2089 = vunpack.c.l.b16 %v2025
      %v2090 = vunpack.c.l.b16 %v2026
      %v2091 = vunpack.c.l.b16 %v2027
      %v2092 = vunpack.c.l.b16 %v2028
      %v2093 = vunpack.c.l.b16 %v2029
      %v2094 = vunpack.c.l.b16 %v2030
      %v2095 = vunpack.c.l.b16 %v2031
      %v2096 = vunpack.c.l.b16 %v2032
      %v2097 = vunpack.c.l.b16 %v2033
      %v2098 = vunpack.c.l.b16 %v2034
      %v2099 = vunpack.c.l.b16 %v2035
      %v2100 = vunpack.c.l.b16 %v2036
      %v2101 = vunpack.c.l.b16 %v2037
      %v2102 = vunpack.c.l.b16 %v2038
      %v2103 = vunpack.c.l.b16 %v2039
      %v2104 = vunpack.c.l.b16 %v2040
      %v2105 = vunpack.c.l.b16 %v2041
      %v2106 = vpack.c.b16 %v2075, %v2074
      %v2107 = vpack.c.b16 %v2077, %v2076
      %v2108 = vpack.c.b16 %v2079, %v2078
      %v2109 = vpack.c.b16 %v2081, %v2080
      %v2110 = vpack.c.b16 %v2083, %v2082
      %v2111 = vpack.c.b16 %v2085, %v2084
      %v2112 = vpack.c.b16 %v2087, %v2086
      %v2113 = vpack.c.b16 %v2089, %v2088
      %v2114 = vpack.c.b16 %v2091, %v2090
      %v2115 = vpack.c.b16 %v2093, %v2092
      %v2116 = vpack.c.b16 %v2095, %v2094
      %v2117 = vpack.c.b16 %v2097, %v2096
      %v2118 = vpack.c.b16 %v2099, %v2098
      %v2119 = vpack.c.b16 %v2101, %v2100
      %v2120 = vpack.c.b16 %v2103, %v2102
      %v2121 = vpack.c.b16 %v2105, %v2104
      %2138 = vmatprep.subr.bf16.mxu0 0
      %2139 = vmatpush1.bf16.msra.mxu0 %v2113
      %2140 = vmatprep.subr.bf16.mxu0 0
      %2141 = vmatpush1.bf16.msra.mxu0 %v2112
      %2142 = vmatprep.subr.bf16.mxu0 0
      %2143 = vmatpush1.bf16.msra.mxu0 %v2111
      %2144 = vmatprep.subr.bf16.mxu0 0
      %2145 = vmatpush1.bf16.msra.mxu0 %v2110
      %2146 = vmatprep.subr.bf16.mxu0 0
      %2147 = vmatpush1.bf16.msra.mxu0 %v2109
      %2148 = vmatprep.subr.bf16.mxu0 0
      %2149 = vmatpush1.bf16.msra.mxu0 %v2108
      %2150 = vmatprep.subr.bf16.mxu0 0
      %2151 = vmatpush1.bf16.msra.mxu0 %v2107
      %2152 = vmatprep.subr.bf16.mxu0 0
      %2153 = vmatpush1.bf16.msra.mxu0 %v2106
      %2154 = vmatprep.subr.bf16.mxu0 0
      %2155 = vmatpush2.bf16.msra.mxu0 %v2121
      %2156 = vmatprep.subr.bf16.mxu0 0
      %2157 = vmatpush2.bf16.msra.mxu0 %v2120
      %2158 = vmatprep.subr.bf16.mxu0 0
      %2159 = vmatpush2.bf16.msra.mxu0 %v2119
      %2160 = vmatprep.subr.bf16.mxu0 0
      %2161 = vmatpush2.bf16.msra.mxu0 %v2118
      %2162 = vmatprep.subr.bf16.mxu0 0
      %2163 = vmatpush2.bf16.msra.mxu0 %v2117
      %2164 = vmatprep.subr.bf16.mxu0 0
      %2165 = vmatpush2.bf16.msra.mxu0 %v2116
      %2166 = vmatprep.subr.bf16.mxu0 0
      %2167 = vmatpush2.bf16.msra.mxu0 %v2115
      %2168 = vmatprep.subr.bf16.mxu0 0
      %2169 = vmatpush2.bf16.msra.mxu0 %v2114
      %2170 = vmatprep.mubr.bf16.mxu0 %v309
      %2171 = vmatmul.mubr.bf16.gmra.mxu0 %v308
      %v2172 = vpop.f32.mrf.mxu0
      %v2173 = vadd.f32 0.0, %v2172
      %v2174 = vpop.f32.mrf.mxu0
      %v2175 = vpop.f32.mrf.mxu0
      %v2176 = vpop.f32.mrf.mxu0
      %2177 = vdwg.mxu0
      %2178 = vst [vmem:[#allocation2 + $0x50] sm:$0xff] %v2173
      %s2179 = scalar_lea.vmem %s218, 1408
      %v2180 = vld [vmem:[%s2179] sm:$0xf]
      %v2181 = vld [vmem:[%s2179 + $0x4] sm:$0xf]
      %v2182 = vld [vmem:[%s2179 + $0x8] sm:$0xf]
      %v2183 = vld [vmem:[%s2179 + $0xc] sm:$0xf]
      %v2184 = vld [vmem:[%s2179 + $0x10] sm:$0xf]
      %v2185 = vld [vmem:[%s2179 + $0x14] sm:$0xf]
      %v2186 = vld [vmem:[%s2179 + $0x18] sm:$0xf]
      %v2187 = vld [vmem:[%s2179 + $0x1c] sm:$0xf]
      %v2188 = vld [vmem:[%s2179 + $0x20] sm:$0xf]
      %v2189 = vld [vmem:[%s2179 + $0x24] sm:$0xf]
      %v2190 = vld [vmem:[%s2179 + $0x28] sm:$0xf]
      %v2191 = vld [vmem:[%s2179 + $0x2c] sm:$0xf]
      %v2192 = vld [vmem:[%s2179 + $0x30] sm:$0xf]
      %v2193 = vld [vmem:[%s2179 + $0x34] sm:$0xf]
      %v2194 = vld [vmem:[%s2179 + $0x38] sm:$0xf]
      %v2195 = vld [vmem:[%s2179 + $0x3c] sm:$0xf]
      %v2196 = vld [vmem:[%s2179 + $0x40] sm:$0xf]
      %v2197 = vld [vmem:[%s2179 + $0x44] sm:$0xf]
      %v2198 = vld [vmem:[%s2179 + $0x48] sm:$0xf]
      %v2199 = vld [vmem:[%s2179 + $0x4c] sm:$0xf]
      %v2200 = vld [vmem:[%s2179 + $0x50] sm:$0xf]
      %v2201 = vld [vmem:[%s2179 + $0x54] sm:$0xf]
      %v2202 = vld [vmem:[%s2179 + $0x58] sm:$0xf]
      %v2203 = vld [vmem:[%s2179 + $0x5c] sm:$0xf]
      %v2204 = vld [vmem:[%s2179 + $0x60] sm:$0xf]
      %v2205 = vld [vmem:[%s2179 + $0x64] sm:$0xf]
      %v2206 = vld [vmem:[%s2179 + $0x68] sm:$0xf]
      %v2207 = vld [vmem:[%s2179 + $0x6c] sm:$0xf]
      %v2208 = vld [vmem:[%s2179 + $0x70] sm:$0xf]
      %v2209 = vld [vmem:[%s2179 + $0x74] sm:$0xf]
      %v2210 = vld [vmem:[%s2179 + $0x78] sm:$0xf]
      %v2211 = vld [vmem:[%s2179 + $0x7c] sm:$0xf]
      %v2244 = vunpack.c.l.b16 %v2180
      %v2245 = vunpack.c.l.b16 %v2181
      %v2246 = vunpack.c.l.b16 %v2182
      %v2247 = vunpack.c.l.b16 %v2183
      %v2248 = vunpack.c.l.b16 %v2184
      %v2249 = vunpack.c.l.b16 %v2185
      %v2250 = vunpack.c.l.b16 %v2186
      %v2251 = vunpack.c.l.b16 %v2187
      %v2252 = vunpack.c.l.b16 %v2188
      %v2253 = vunpack.c.l.b16 %v2189
      %v2254 = vunpack.c.l.b16 %v2190
      %v2255 = vunpack.c.l.b16 %v2191
      %v2256 = vunpack.c.l.b16 %v2192
      %v2257 = vunpack.c.l.b16 %v2193
      %v2258 = vunpack.c.l.b16 %v2194
      %v2259 = vunpack.c.l.b16 %v2195
      %v2260 = vunpack.c.l.b16 %v2196
      %v2261 = vunpack.c.l.b16 %v2197
      %v2262 = vunpack.c.l.b16 %v2198
      %v2263 = vunpack.c.l.b16 %v2199
      %v2264 = vunpack.c.l.b16 %v2200
      %v2265 = vunpack.c.l.b16 %v2201
      %v2266 = vunpack.c.l.b16 %v2202
      %v2267 = vunpack.c.l.b16 %v2203
      %v2268 = vunpack.c.l.b16 %v2204
      %v2269 = vunpack.c.l.b16 %v2205
      %v2270 = vunpack.c.l.b16 %v2206
      %v2271 = vunpack.c.l.b16 %v2207
      %v2272 = vunpack.c.l.b16 %v2208
      %v2273 = vunpack.c.l.b16 %v2209
      %v2274 = vunpack.c.l.b16 %v2210
      %v2275 = vunpack.c.l.b16 %v2211
      %v2276 = vpack.c.b16 %v2245, %v2244
      %v2277 = vpack.c.b16 %v2247, %v2246
      %v2278 = vpack.c.b16 %v2249, %v2248
      %v2279 = vpack.c.b16 %v2251, %v2250
      %v2280 = vpack.c.b16 %v2253, %v2252
      %v2281 = vpack.c.b16 %v2255, %v2254
      %v2282 = vpack.c.b16 %v2257, %v2256
      %v2283 = vpack.c.b16 %v2259, %v2258
      %v2284 = vpack.c.b16 %v2261, %v2260
      %v2285 = vpack.c.b16 %v2263, %v2262
      %v2286 = vpack.c.b16 %v2265, %v2264
      %v2287 = vpack.c.b16 %v2267, %v2266
      %v2288 = vpack.c.b16 %v2269, %v2268
      %v2289 = vpack.c.b16 %v2271, %v2270
      %v2290 = vpack.c.b16 %v2273, %v2272
      %v2291 = vpack.c.b16 %v2275, %v2274
      %2308 = vmatprep.subr.bf16.mxu0 0
      %2309 = vmatpush1.bf16.msra.mxu0 %v2283
      %2310 = vmatprep.subr.bf16.mxu0 0
      %2311 = vmatpush1.bf16.msra.mxu0 %v2282
      %2312 = vmatprep.subr.bf16.mxu0 0
      %2313 = vmatpush1.bf16.msra.mxu0 %v2281
      %2314 = vmatprep.subr.bf16.mxu0 0
      %2315 = vmatpush1.bf16.msra.mxu0 %v2280
      %2316 = vmatprep.subr.bf16.mxu0 0
      %2317 = vmatpush1.bf16.msra.mxu0 %v2279
      %2318 = vmatprep.subr.bf16.mxu0 0
      %2319 = vmatpush1.bf16.msra.mxu0 %v2278
      %2320 = vmatprep.subr.bf16.mxu0 0
      %2321 = vmatpush1.bf16.msra.mxu0 %v2277
      %2322 = vmatprep.subr.bf16.mxu0 0
      %2323 = vmatpush1.bf16.msra.mxu0 %v2276
      %2324 = vmatprep.subr.bf16.mxu0 0
      %2325 = vmatpush2.bf16.msra.mxu0 %v2291
      %2326 = vmatprep.subr.bf16.mxu0 0
      %2327 = vmatpush2.bf16.msra.mxu0 %v2290
      %2328 = vmatprep.subr.bf16.mxu0 0
      %2329 = vmatpush2.bf16.msra.mxu0 %v2289
      %2330 = vmatprep.subr.bf16.mxu0 0
      %2331 = vmatpush2.bf16.msra.mxu0 %v2288
      %2332 = vmatprep.subr.bf16.mxu0 0
      %2333 = vmatpush2.bf16.msra.mxu0 %v2287
      %2334 = vmatprep.subr.bf16.mxu0 0
      %2335 = vmatpush2.bf16.msra.mxu0 %v2286
      %2336 = vmatprep.subr.bf16.mxu0 0
      %2337 = vmatpush2.bf16.msra.mxu0 %v2285
      %2338 = vmatprep.subr.bf16.mxu0 0
      %2339 = vmatpush2.bf16.msra.mxu0 %v2284
      %2340 = vmatprep.mubr.bf16.mxu0 %v309
      %2341 = vmatmul.mubr.bf16.gmra.mxu0 %v308
      %v2342 = vpop.f32.mrf.mxu0
      %v2343 = vadd.f32 0.0, %v2342
      %v2344 = vpop.f32.mrf.mxu0
      %v2345 = vpop.f32.mrf.mxu0
      %v2346 = vpop.f32.mrf.mxu0
      %2347 = vdwg.mxu0
      %2348 = vst [vmem:[#allocation2 + $0x58] sm:$0xff] %v2343
      %s2349 = scalar_lea.vmem %s218, 1536
      %v2350 = vld [vmem:[%s2349] sm:$0xf]
      %v2351 = vld [vmem:[%s2349 + $0x4] sm:$0xf]
      %v2352 = vld [vmem:[%s2349 + $0x8] sm:$0xf]
      %v2353 = vld [vmem:[%s2349 + $0xc] sm:$0xf]
      %v2354 = vld [vmem:[%s2349 + $0x10] sm:$0xf]
      %v2355 = vld [vmem:[%s2349 + $0x14] sm:$0xf]
      %v2356 = vld [vmem:[%s2349 + $0x18] sm:$0xf]
      %v2357 = vld [vmem:[%s2349 + $0x1c] sm:$0xf]
      %v2358 = vld [vmem:[%s2349 + $0x20] sm:$0xf]
      %v2359 = vld [vmem:[%s2349 + $0x24] sm:$0xf]
      %v2360 = vld [vmem:[%s2349 + $0x28] sm:$0xf]
      %v2361 = vld [vmem:[%s2349 + $0x2c] sm:$0xf]
      %v2362 = vld [vmem:[%s2349 + $0x30] sm:$0xf]
      %v2363 = vld [vmem:[%s2349 + $0x34] sm:$0xf]
      %v2364 = vld [vmem:[%s2349 + $0x38] sm:$0xf]
      %v2365 = vld [vmem:[%s2349 + $0x3c] sm:$0xf]
      %v2366 = vld [vmem:[%s2349 + $0x40] sm:$0xf]
      %v2367 = vld [vmem:[%s2349 + $0x44] sm:$0xf]
      %v2368 = vld [vmem:[%s2349 + $0x48] sm:$0xf]
      %v2369 = vld [vmem:[%s2349 + $0x4c] sm:$0xf]
      %v2370 = vld [vmem:[%s2349 + $0x50] sm:$0xf]
      %v2371 = vld [vmem:[%s2349 + $0x54] sm:$0xf]
      %v2372 = vld [vmem:[%s2349 + $0x58] sm:$0xf]
      %v2373 = vld [vmem:[%s2349 + $0x5c] sm:$0xf]
      %v2374 = vld [vmem:[%s2349 + $0x60] sm:$0xf]
      %v2375 = vld [vmem:[%s2349 + $0x64] sm:$0xf]
      %v2376 = vld [vmem:[%s2349 + $0x68] sm:$0xf]
      %v2377 = vld [vmem:[%s2349 + $0x6c] sm:$0xf]
      %v2378 = vld [vmem:[%s2349 + $0x70] sm:$0xf]
      %v2379 = vld [vmem:[%s2349 + $0x74] sm:$0xf]
      %v2380 = vld [vmem:[%s2349 + $0x78] sm:$0xf]
      %v2381 = vld [vmem:[%s2349 + $0x7c] sm:$0xf]
      %v2414 = vunpack.c.l.b16 %v2350
      %v2415 = vunpack.c.l.b16 %v2351
      %v2416 = vunpack.c.l.b16 %v2352
      %v2417 = vunpack.c.l.b16 %v2353
      %v2418 = vunpack.c.l.b16 %v2354
      %v2419 = vunpack.c.l.b16 %v2355
      %v2420 = vunpack.c.l.b16 %v2356
      %v2421 = vunpack.c.l.b16 %v2357
      %v2422 = vunpack.c.l.b16 %v2358
      %v2423 = vunpack.c.l.b16 %v2359
      %v2424 = vunpack.c.l.b16 %v2360
      %v2425 = vunpack.c.l.b16 %v2361
      %v2426 = vunpack.c.l.b16 %v2362
      %v2427 = vunpack.c.l.b16 %v2363
      %v2428 = vunpack.c.l.b16 %v2364
      %v2429 = vunpack.c.l.b16 %v2365
      %v2430 = vunpack.c.l.b16 %v2366
      %v2431 = vunpack.c.l.b16 %v2367
      %v2432 = vunpack.c.l.b16 %v2368
      %v2433 = vunpack.c.l.b16 %v2369
      %v2434 = vunpack.c.l.b16 %v2370
      %v2435 = vunpack.c.l.b16 %v2371
      %v2436 = vunpack.c.l.b16 %v2372
      %v2437 = vunpack.c.l.b16 %v2373
      %v2438 = vunpack.c.l.b16 %v2374
      %v2439 = vunpack.c.l.b16 %v2375
      %v2440 = vunpack.c.l.b16 %v2376
      %v2441 = vunpack.c.l.b16 %v2377
      %v2442 = vunpack.c.l.b16 %v2378
      %v2443 = vunpack.c.l.b16 %v2379
      %v2444 = vunpack.c.l.b16 %v2380
      %v2445 = vunpack.c.l.b16 %v2381
      %v2446 = vpack.c.b16 %v2415, %v2414
      %v2447 = vpack.c.b16 %v2417, %v2416
      %v2448 = vpack.c.b16 %v2419, %v2418
      %v2449 = vpack.c.b16 %v2421, %v2420
      %v2450 = vpack.c.b16 %v2423, %v2422
      %v2451 = vpack.c.b16 %v2425, %v2424
      %v2452 = vpack.c.b16 %v2427, %v2426
      %v2453 = vpack.c.b16 %v2429, %v2428
      %v2454 = vpack.c.b16 %v2431, %v2430
      %v2455 = vpack.c.b16 %v2433, %v2432
      %v2456 = vpack.c.b16 %v2435, %v2434
      %v2457 = vpack.c.b16 %v2437, %v2436
      %v2458 = vpack.c.b16 %v2439, %v2438
      %v2459 = vpack.c.b16 %v2441, %v2440
      %v2460 = vpack.c.b16 %v2443, %v2442
      %v2461 = vpack.c.b16 %v2445, %v2444
      %2478 = vmatprep.subr.bf16.mxu0 0
      %2479 = vmatpush1.bf16.msra.mxu0 %v2453
      %2480 = vmatprep.subr.bf16.mxu0 0
      %2481 = vmatpush1.bf16.msra.mxu0 %v2452
      %2482 = vmatprep.subr.bf16.mxu0 0
      %2483 = vmatpush1.bf16.msra.mxu0 %v2451
      %2484 = vmatprep.subr.bf16.mxu0 0
      %2485 = vmatpush1.bf16.msra.mxu0 %v2450
      %2486 = vmatprep.subr.bf16.mxu0 0
      %2487 = vmatpush1.bf16.msra.mxu0 %v2449
      %2488 = vmatprep.subr.bf16.mxu0 0
      %2489 = vmatpush1.bf16.msra.mxu0 %v2448
      %2490 = vmatprep.subr.bf16.mxu0 0
      %2491 = vmatpush1.bf16.msra.mxu0 %v2447
      %2492 = vmatprep.subr.bf16.mxu0 0
      %2493 = vmatpush1.bf16.msra.mxu0 %v2446
      %2494 = vmatprep.subr.bf16.mxu0 0
      %2495 = vmatpush2.bf16.msra.mxu0 %v2461
      %2496 = vmatprep.subr.bf16.mxu0 0
      %2497 = vmatpush2.bf16.msra.mxu0 %v2460
      %2498 = vmatprep.subr.bf16.mxu0 0
      %2499 = vmatpush2.bf16.msra.mxu0 %v2459
      %2500 = vmatprep.subr.bf16.mxu0 0
      %2501 = vmatpush2.bf16.msra.mxu0 %v2458
      %2502 = vmatprep.subr.bf16.mxu0 0
      %2503 = vmatpush2.bf16.msra.mxu0 %v2457
      %2504 = vmatprep.subr.bf16.mxu0 0
      %2505 = vmatpush2.bf16.msra.mxu0 %v2456
      %2506 = vmatprep.subr.bf16.mxu0 0
      %2507 = vmatpush2.bf16.msra.mxu0 %v2455
      %2508 = vmatprep.subr.bf16.mxu0 0
      %2509 = vmatpush2.bf16.msra.mxu0 %v2454
      %2510 = vmatprep.mubr.bf16.mxu0 %v309
      %2511 = vmatmul.mubr.bf16.gmra.mxu0 %v308
      %v2512 = vpop.f32.mrf.mxu0
      %v2513 = vadd.f32 0.0, %v2512
      %v2514 = vpop.f32.mrf.mxu0
      %v2515 = vpop.f32.mrf.mxu0
      %v2516 = vpop.f32.mrf.mxu0
      %2517 = vdwg.mxu0
      %2518 = vst [vmem:[#allocation2 + $0x60] sm:$0xff] %v2513
      %s2519 = scalar_lea.vmem %s218, 1664
      %v2520 = vld [vmem:[%s2519] sm:$0xf]
      %v2521 = vld [vmem:[%s2519 + $0x4] sm:$0xf]
      %v2522 = vld [vmem:[%s2519 + $0x8] sm:$0xf]
      %v2523 = vld [vmem:[%s2519 + $0xc] sm:$0xf]
      %v2524 = vld [vmem:[%s2519 + $0x10] sm:$0xf]
      %v2525 = vld [vmem:[%s2519 + $0x14] sm:$0xf]
      %v2526 = vld [vmem:[%s2519 + $0x18] sm:$0xf]
      %v2527 = vld [vmem:[%s2519 + $0x1c] sm:$0xf]
      %v2528 = vld [vmem:[%s2519 + $0x20] sm:$0xf]
      %v2529 = vld [vmem:[%s2519 + $0x24] sm:$0xf]
      %v2530 = vld [vmem:[%s2519 + $0x28] sm:$0xf]
      %v2531 = vld [vmem:[%s2519 + $0x2c] sm:$0xf]
      %v2532 = vld [vmem:[%s2519 + $0x30] sm:$0xf]
      %v2533 = vld [vmem:[%s2519 + $0x34] sm:$0xf]
      %v2534 = vld [vmem:[%s2519 + $0x38] sm:$0xf]
      %v2535 = vld [vmem:[%s2519 + $0x3c] sm:$0xf]
      %v2536 = vld [vmem:[%s2519 + $0x40] sm:$0xf]
      %v2537 = vld [vmem:[%s2519 + $0x44] sm:$0xf]
      %v2538 = vld [vmem:[%s2519 + $0x48] sm:$0xf]
      %v2539 = vld [vmem:[%s2519 + $0x4c] sm:$0xf]
      %v2540 = vld [vmem:[%s2519 + $0x50] sm:$0xf]
      %v2541 = vld [vmem:[%s2519 + $0x54] sm:$0xf]
      %v2542 = vld [vmem:[%s2519 + $0x58] sm:$0xf]
      %v2543 = vld [vmem:[%s2519 + $0x5c] sm:$0xf]
      %v2544 = vld [vmem:[%s2519 + $0x60] sm:$0xf]
      %v2545 = vld [vmem:[%s2519 + $0x64] sm:$0xf]
      %v2546 = vld [vmem:[%s2519 + $0x68] sm:$0xf]
      %v2547 = vld [vmem:[%s2519 + $0x6c] sm:$0xf]
      %v2548 = vld [vmem:[%s2519 + $0x70] sm:$0xf]
      %v2549 = vld [vmem:[%s2519 + $0x74] sm:$0xf]
      %v2550 = vld [vmem:[%s2519 + $0x78] sm:$0xf]
      %v2551 = vld [vmem:[%s2519 + $0x7c] sm:$0xf]
      %v2584 = vunpack.c.l.b16 %v2520
      %v2585 = vunpack.c.l.b16 %v2521
      %v2586 = vunpack.c.l.b16 %v2522
      %v2587 = vunpack.c.l.b16 %v2523
      %v2588 = vunpack.c.l.b16 %v2524
      %v2589 = vunpack.c.l.b16 %v2525
      %v2590 = vunpack.c.l.b16 %v2526
      %v2591 = vunpack.c.l.b16 %v2527
      %v2592 = vunpack.c.l.b16 %v2528
      %v2593 = vunpack.c.l.b16 %v2529
      %v2594 = vunpack.c.l.b16 %v2530
      %v2595 = vunpack.c.l.b16 %v2531
      %v2596 = vunpack.c.l.b16 %v2532
      %v2597 = vunpack.c.l.b16 %v2533
      %v2598 = vunpack.c.l.b16 %v2534
      %v2599 = vunpack.c.l.b16 %v2535
      %v2600 = vunpack.c.l.b16 %v2536
      %v2601 = vunpack.c.l.b16 %v2537
      %v2602 = vunpack.c.l.b16 %v2538
      %v2603 = vunpack.c.l.b16 %v2539
      %v2604 = vunpack.c.l.b16 %v2540
      %v2605 = vunpack.c.l.b16 %v2541
      %v2606 = vunpack.c.l.b16 %v2542
      %v2607 = vunpack.c.l.b16 %v2543
      %v2608 = vunpack.c.l.b16 %v2544
      %v2609 = vunpack.c.l.b16 %v2545
      %v2610 = vunpack.c.l.b16 %v2546
      %v2611 = vunpack.c.l.b16 %v2547
      %v2612 = vunpack.c.l.b16 %v2548
      %v2613 = vunpack.c.l.b16 %v2549
      %v2614 = vunpack.c.l.b16 %v2550
      %v2615 = vunpack.c.l.b16 %v2551
      %v2616 = vpack.c.b16 %v2585, %v2584
      %v2617 = vpack.c.b16 %v2587, %v2586
      %v2618 = vpack.c.b16 %v2589, %v2588
      %v2619 = vpack.c.b16 %v2591, %v2590
      %v2620 = vpack.c.b16 %v2593, %v2592
      %v2621 = vpack.c.b16 %v2595, %v2594
      %v2622 = vpack.c.b16 %v2597, %v2596
      %v2623 = vpack.c.b16 %v2599, %v2598
      %v2624 = vpack.c.b16 %v2601, %v2600
      %v2625 = vpack.c.b16 %v2603, %v2602
      %v2626 = vpack.c.b16 %v2605, %v2604
      %v2627 = vpack.c.b16 %v2607, %v2606
      %v2628 = vpack.c.b16 %v2609, %v2608
      %v2629 = vpack.c.b16 %v2611, %v2610
      %v2630 = vpack.c.b16 %v2613, %v2612
      %v2631 = vpack.c.b16 %v2615, %v2614
      %2648 = vmatprep.subr.bf16.mxu0 0
      %2649 = vmatpush1.bf16.msra.mxu0 %v2623
      %2650 = vmatprep.subr.bf16.mxu0 0
      %2651 = vmatpush1.bf16.msra.mxu0 %v2622
      %2652 = vmatprep.subr.bf16.mxu0 0
      %2653 = vmatpush1.bf16.msra.mxu0 %v2621
      %2654 = vmatprep.subr.bf16.mxu0 0
      %2655 = vmatpush1.bf16.msra.mxu0 %v2620
      %2656 = vmatprep.subr.bf16.mxu0 0
      %2657 = vmatpush1.bf16.msra.mxu0 %v2619
      %2658 = vmatprep.subr.bf16.mxu0 0
      %2659 = vmatpush1.bf16.msra.mxu0 %v2618
      %2660 = vmatprep.subr.bf16.mxu0 0
      %2661 = vmatpush1.bf16.msra.mxu0 %v2617
      %2662 = vmatprep.subr.bf16.mxu0 0
      %2663 = vmatpush1.bf16.msra.mxu0 %v2616
      %2664 = vmatprep.subr.bf16.mxu0 0
      %2665 = vmatpush2.bf16.msra.mxu0 %v2631
      %2666 = vmatprep.subr.bf16.mxu0 0
      %2667 = vmatpush2.bf16.msra.mxu0 %v2630
      %2668 = vmatprep.subr.bf16.mxu0 0
      %2669 = vmatpush2.bf16.msra.mxu0 %v2629
      %2670 = vmatprep.subr.bf16.mxu0 0
      %2671 = vmatpush2.bf16.msra.mxu0 %v2628
      %2672 = vmatprep.subr.bf16.mxu0 0
      %2673 = vmatpush2.bf16.msra.mxu0 %v2627
      %2674 = vmatprep.subr.bf16.mxu0 0
      %2675 = vmatpush2.bf16.msra.mxu0 %v2626
      %2676 = vmatprep.subr.bf16.mxu0 0
      %2677 = vmatpush2.bf16.msra.mxu0 %v2625
      %2678 = vmatprep.subr.bf16.mxu0 0
      %2679 = vmatpush2.bf16.msra.mxu0 %v2624
      %2680 = vmatprep.mubr.bf16.mxu0 %v309
      %2681 = vmatmul.mubr.bf16.gmra.mxu0 %v308
      %v2682 = vpop.f32.mrf.mxu0
      %v2683 = vadd.f32 0.0, %v2682
      %v2684 = vpop.f32.mrf.mxu0
      %v2685 = vpop.f32.mrf.mxu0
      %v2686 = vpop.f32.mrf.mxu0
      %2687 = vdwg.mxu0
      %2688 = vst [vmem:[#allocation2 + $0x68] sm:$0xff] %v2683
      %s2689 = scalar_lea.vmem %s218, 1792
      %v2690 = vld [vmem:[%s2689] sm:$0xf]
      %v2691 = vld [vmem:[%s2689 + $0x4] sm:$0xf]
      %v2692 = vld [vmem:[%s2689 + $0x8] sm:$0xf]
      %v2693 = vld [vmem:[%s2689 + $0xc] sm:$0xf]
      %v2694 = vld [vmem:[%s2689 + $0x10] sm:$0xf]
      %v2695 = vld [vmem:[%s2689 + $0x14] sm:$0xf]
      %v2696 = vld [vmem:[%s2689 + $0x18] sm:$0xf]
      %v2697 = vld [vmem:[%s2689 + $0x1c] sm:$0xf]
      %v2698 = vld [vmem:[%s2689 + $0x20] sm:$0xf]
      %v2699 = vld [vmem:[%s2689 + $0x24] sm:$0xf]
      %v2700 = vld [vmem:[%s2689 + $0x28] sm:$0xf]
      %v2701 = vld [vmem:[%s2689 + $0x2c] sm:$0xf]
      %v2702 = vld [vmem:[%s2689 + $0x30] sm:$0xf]
      %v2703 = vld [vmem:[%s2689 + $0x34] sm:$0xf]
      %v2704 = vld [vmem:[%s2689 + $0x38] sm:$0xf]
      %v2705 = vld [vmem:[%s2689 + $0x3c] sm:$0xf]
      %v2706 = vld [vmem:[%s2689 + $0x40] sm:$0xf]
      %v2707 = vld [vmem:[%s2689 + $0x44] sm:$0xf]
      %v2708 = vld [vmem:[%s2689 + $0x48] sm:$0xf]
      %v2709 = vld [vmem:[%s2689 + $0x4c] sm:$0xf]
      %v2710 = vld [vmem:[%s2689 + $0x50] sm:$0xf]
      %v2711 = vld [vmem:[%s2689 + $0x54] sm:$0xf]
      %v2712 = vld [vmem:[%s2689 + $0x58] sm:$0xf]
      %v2713 = vld [vmem:[%s2689 + $0x5c] sm:$0xf]
      %v2714 = vld [vmem:[%s2689 + $0x60] sm:$0xf]
      %v2715 = vld [vmem:[%s2689 + $0x64] sm:$0xf]
      %v2716 = vld [vmem:[%s2689 + $0x68] sm:$0xf]
      %v2717 = vld [vmem:[%s2689 + $0x6c] sm:$0xf]
      %v2718 = vld [vmem:[%s2689 + $0x70] sm:$0xf]
      %v2719 = vld [vmem:[%s2689 + $0x74] sm:$0xf]
      %v2720 = vld [vmem:[%s2689 + $0x78] sm:$0xf]
      %v2721 = vld [vmem:[%s2689 + $0x7c] sm:$0xf]
      %v2754 = vunpack.c.l.b16 %v2690
      %v2755 = vunpack.c.l.b16 %v2691
      %v2756 = vunpack.c.l.b16 %v2692
      %v2757 = vunpack.c.l.b16 %v2693
      %v2758 = vunpack.c.l.b16 %v2694
      %v2759 = vunpack.c.l.b16 %v2695
      %v2760 = vunpack.c.l.b16 %v2696
      %v2761 = vunpack.c.l.b16 %v2697
      %v2762 = vunpack.c.l.b16 %v2698
      %v2763 = vunpack.c.l.b16 %v2699
      %v2764 = vunpack.c.l.b16 %v2700
      %v2765 = vunpack.c.l.b16 %v2701
      %v2766 = vunpack.c.l.b16 %v2702
      %v2767 = vunpack.c.l.b16 %v2703
      %v2768 = vunpack.c.l.b16 %v2704
      %v2769 = vunpack.c.l.b16 %v2705
      %v2770 = vunpack.c.l.b16 %v2706
      %v2771 = vunpack.c.l.b16 %v2707
      %v2772 = vunpack.c.l.b16 %v2708
      %v2773 = vunpack.c.l.b16 %v2709
      %v2774 = vunpack.c.l.b16 %v2710
      %v2775 = vunpack.c.l.b16 %v2711
      %v2776 = vunpack.c.l.b16 %v2712
      %v2777 = vunpack.c.l.b16 %v2713
      %v2778 = vunpack.c.l.b16 %v2714
      %v2779 = vunpack.c.l.b16 %v2715
      %v2780 = vunpack.c.l.b16 %v2716
      %v2781 = vunpack.c.l.b16 %v2717
      %v2782 = vunpack.c.l.b16 %v2718
      %v2783 = vunpack.c.l.b16 %v2719
      %v2784 = vunpack.c.l.b16 %v2720
      %v2785 = vunpack.c.l.b16 %v2721
      %v2786 = vpack.c.b16 %v2755, %v2754
      %v2787 = vpack.c.b16 %v2757, %v2756
      %v2788 = vpack.c.b16 %v2759, %v2758
      %v2789 = vpack.c.b16 %v2761, %v2760
      %v2790 = vpack.c.b16 %v2763, %v2762
      %v2791 = vpack.c.b16 %v2765, %v2764
      %v2792 = vpack.c.b16 %v2767, %v2766
      %v2793 = vpack.c.b16 %v2769, %v2768
      %v2794 = vpack.c.b16 %v2771, %v2770
      %v2795 = vpack.c.b16 %v2773, %v2772
      %v2796 = vpack.c.b16 %v2775, %v2774
      %v2797 = vpack.c.b16 %v2777, %v2776
      %v2798 = vpack.c.b16 %v2779, %v2778
      %v2799 = vpack.c.b16 %v2781, %v2780
      %v2800 = vpack.c.b16 %v2783, %v2782
      %v2801 = vpack.c.b16 %v2785, %v2784
      %2818 = vmatprep.subr.bf16.mxu0 0
      %2819 = vmatpush1.bf16.msra.mxu0 %v2793
      %2820 = vmatprep.subr.bf16.mxu0 0
      %2821 = vmatpush1.bf16.msra.mxu0 %v2792
      %2822 = vmatprep.subr.bf16.mxu0 0
      %2823 = vmatpush1.bf16.msra.mxu0 %v2791
      %2824 = vmatprep.subr.bf16.mxu0 0
      %2825 = vmatpush1.bf16.msra.mxu0 %v2790
      %2826 = vmatprep.subr.bf16.mxu0 0
      %2827 = vmatpush1.bf16.msra.mxu0 %v2789
      %2828 = vmatprep.subr.bf16.mxu0 0
      %2829 = vmatpush1.bf16.msra.mxu0 %v2788
      %2830 = vmatprep.subr.bf16.mxu0 0
      %2831 = vmatpush1.bf16.msra.mxu0 %v2787
      %2832 = vmatprep.subr.bf16.mxu0 0
      %2833 = vmatpush1.bf16.msra.mxu0 %v2786
      %2834 = vmatprep.subr.bf16.mxu0 0
      %2835 = vmatpush2.bf16.msra.mxu0 %v2801
      %2836 = vmatprep.subr.bf16.mxu0 0
      %2837 = vmatpush2.bf16.msra.mxu0 %v2800
      %2838 = vmatprep.subr.bf16.mxu0 0
      %2839 = vmatpush2.bf16.msra.mxu0 %v2799
      %2840 = vmatprep.subr.bf16.mxu0 0
      %2841 = vmatpush2.bf16.msra.mxu0 %v2798
      %2842 = vmatprep.subr.bf16.mxu0 0
      %2843 = vmatpush2.bf16.msra.mxu0 %v2797
      %2844 = vmatprep.subr.bf16.mxu0 0
      %2845 = vmatpush2.bf16.msra.mxu0 %v2796
      %2846 = vmatprep.subr.bf16.mxu0 0
      %2847 = vmatpush2.bf16.msra.mxu0 %v2795
      %2848 = vmatprep.subr.bf16.mxu0 0
      %2849 = vmatpush2.bf16.msra.mxu0 %v2794
      %2850 = vmatprep.mubr.bf16.mxu0 %v309
      %2851 = vmatmul.mubr.bf16.gmra.mxu0 %v308
      %v2852 = vpop.f32.mrf.mxu0
      %v2853 = vadd.f32 0.0, %v2852
      %v2854 = vpop.f32.mrf.mxu0
      %v2855 = vpop.f32.mrf.mxu0
      %v2856 = vpop.f32.mrf.mxu0
      %2857 = vdwg.mxu0
      %2858 = vst [vmem:[#allocation2 + $0x70] sm:$0xff] %v2853
      %s2859 = scalar_lea.vmem %s218, 1920
      %v2860 = vld [vmem:[%s2859] sm:$0xf]
      %v2861 = vld [vmem:[%s2859 + $0x4] sm:$0xf]
      %v2862 = vld [vmem:[%s2859 + $0x8] sm:$0xf]
      %v2863 = vld [vmem:[%s2859 + $0xc] sm:$0xf]
      %v2864 = vld [vmem:[%s2859 + $0x10] sm:$0xf]
      %v2865 = vld [vmem:[%s2859 + $0x14] sm:$0xf]
      %v2866 = vld [vmem:[%s2859 + $0x18] sm:$0xf]
      %v2867 = vld [vmem:[%s2859 + $0x1c] sm:$0xf]
      %v2868 = vld [vmem:[%s2859 + $0x20] sm:$0xf]
      %v2869 = vld [vmem:[%s2859 + $0x24] sm:$0xf]
      %v2870 = vld [vmem:[%s2859 + $0x28] sm:$0xf]
      %v2871 = vld [vmem:[%s2859 + $0x2c] sm:$0xf]
      %v2872 = vld [vmem:[%s2859 + $0x30] sm:$0xf]
      %v2873 = vld [vmem:[%s2859 + $0x34] sm:$0xf]
      %v2874 = vld [vmem:[%s2859 + $0x38] sm:$0xf]
      %v2875 = vld [vmem:[%s2859 + $0x3c] sm:$0xf]
      %v2876 = vld [vmem:[%s2859 + $0x40] sm:$0xf]
      %v2877 = vld [vmem:[%s2859 + $0x44] sm:$0xf]
      %v2878 = vld [vmem:[%s2859 + $0x48] sm:$0xf]
      %v2879 = vld [vmem:[%s2859 + $0x4c] sm:$0xf]
      %v2880 = vld [vmem:[%s2859 + $0x50] sm:$0xf]
      %v2881 = vld [vmem:[%s2859 + $0x54] sm:$0xf]
      %v2882 = vld [vmem:[%s2859 + $0x58] sm:$0xf]
      %v2883 = vld [vmem:[%s2859 + $0x5c] sm:$0xf]
      %v2884 = vld [vmem:[%s2859 + $0x60] sm:$0xf]
      %v2885 = vld [vmem:[%s2859 + $0x64] sm:$0xf]
      %v2886 = vld [vmem:[%s2859 + $0x68] sm:$0xf]
      %v2887 = vld [vmem:[%s2859 + $0x6c] sm:$0xf]
      %v2888 = vld [vmem:[%s2859 + $0x70] sm:$0xf]
      %v2889 = vld [vmem:[%s2859 + $0x74] sm:$0xf]
      %v2890 = vld [vmem:[%s2859 + $0x78] sm:$0xf]
      %v2891 = vld [vmem:[%s2859 + $0x7c] sm:$0xf]
      %v2924 = vunpack.c.l.b16 %v2860
      %v2925 = vunpack.c.l.b16 %v2861
      %v2926 = vunpack.c.l.b16 %v2862
      %v2927 = vunpack.c.l.b16 %v2863
      %v2928 = vunpack.c.l.b16 %v2864
      %v2929 = vunpack.c.l.b16 %v2865
      %v2930 = vunpack.c.l.b16 %v2866
      %v2931 = vunpack.c.l.b16 %v2867
      %v2932 = vunpack.c.l.b16 %v2868
      %v2933 = vunpack.c.l.b16 %v2869
      %v2934 = vunpack.c.l.b16 %v2870
      %v2935 = vunpack.c.l.b16 %v2871
      %v2936 = vunpack.c.l.b16 %v2872
      %v2937 = vunpack.c.l.b16 %v2873
      %v2938 = vunpack.c.l.b16 %v2874
      %v2939 = vunpack.c.l.b16 %v2875
      %v2940 = vunpack.c.l.b16 %v2876
      %v2941 = vunpack.c.l.b16 %v2877
      %v2942 = vunpack.c.l.b16 %v2878
      %v2943 = vunpack.c.l.b16 %v2879
      %v2944 = vunpack.c.l.b16 %v2880
      %v2945 = vunpack.c.l.b16 %v2881
      %v2946 = vunpack.c.l.b16 %v2882
      %v2947 = vunpack.c.l.b16 %v2883
      %v2948 = vunpack.c.l.b16 %v2884
      %v2949 = vunpack.c.l.b16 %v2885
      %v2950 = vunpack.c.l.b16 %v2886
      %v2951 = vunpack.c.l.b16 %v2887
      %v2952 = vunpack.c.l.b16 %v2888
      %v2953 = vunpack.c.l.b16 %v2889
      %v2954 = vunpack.c.l.b16 %v2890
      %v2955 = vunpack.c.l.b16 %v2891
      %v2956 = vpack.c.b16 %v2925, %v2924
      %v2957 = vpack.c.b16 %v2927, %v2926
      %v2958 = vpack.c.b16 %v2929, %v2928
      %v2959 = vpack.c.b16 %v2931, %v2930
      %v2960 = vpack.c.b16 %v2933, %v2932
      %v2961 = vpack.c.b16 %v2935, %v2934
      %v2962 = vpack.c.b16 %v2937, %v2936
      %v2963 = vpack.c.b16 %v2939, %v2938
      %v2964 = vpack.c.b16 %v2941, %v2940
      %v2965 = vpack.c.b16 %v2943, %v2942
      %v2966 = vpack.c.b16 %v2945, %v2944
      %v2967 = vpack.c.b16 %v2947, %v2946
      %v2968 = vpack.c.b16 %v2949, %v2948
      %v2969 = vpack.c.b16 %v2951, %v2950
      %v2970 = vpack.c.b16 %v2953, %v2952
      %v2971 = vpack.c.b16 %v2955, %v2954
      %2988 = vmatprep.subr.bf16.mxu0 0
      %2989 = vmatpush1.bf16.msra.mxu0 %v2963
      %2990 = vmatprep.subr.bf16.mxu0 0
      %2991 = vmatpush1.bf16.msra.mxu0 %v2962
      %2992 = vmatprep.subr.bf16.mxu0 0
      %2993 = vmatpush1.bf16.msra.mxu0 %v2961
      %2994 = vmatprep.subr.bf16.mxu0 0
      %2995 = vmatpush1.bf16.msra.mxu0 %v2960
      %2996 = vmatprep.subr.bf16.mxu0 0
      %2997 = vmatpush1.bf16.msra.mxu0 %v2959
      %2998 = vmatprep.subr.bf16.mxu0 0
      %2999 = vmatpush1.bf16.msra.mxu0 %v2958
      %3000 = vmatprep.subr.bf16.mxu0 0
      %3001 = vmatpush1.bf16.msra.mxu0 %v2957
      %3002 = vmatprep.subr.bf16.mxu0 0
      %3003 = vmatpush1.bf16.msra.mxu0 %v2956
      %3004 = vmatprep.subr.bf16.mxu0 0
      %3005 = vmatpush2.bf16.msra.mxu0 %v2971
      %3006 = vmatprep.subr.bf16.mxu0 0
      %3007 = vmatpush2.bf16.msra.mxu0 %v2970
      %3008 = vmatprep.subr.bf16.mxu0 0
      %3009 = vmatpush2.bf16.msra.mxu0 %v2969
      %3010 = vmatprep.subr.bf16.mxu0 0
      %3011 = vmatpush2.bf16.msra.mxu0 %v2968
      %3012 = vmatprep.subr.bf16.mxu0 0
      %3013 = vmatpush2.bf16.msra.mxu0 %v2967
      %3014 = vmatprep.subr.bf16.mxu0 0
      %3015 = vmatpush2.bf16.msra.mxu0 %v2966
      %3016 = vmatprep.subr.bf16.mxu0 0
      %3017 = vmatpush2.bf16.msra.mxu0 %v2965
      %3018 = vmatprep.subr.bf16.mxu0 0
      %3019 = vmatpush2.bf16.msra.mxu0 %v2964
      %3020 = vmatprep.mubr.bf16.mxu0 %v309
      %3021 = vmatmul.mubr.bf16.gmra.mxu0 %v308
      %v3022 = vpop.f32.mrf.mxu0
      %v3023 = vadd.f32 0.0, %v3022
      %v3024 = vpop.f32.mrf.mxu0
      %v3025 = vpop.f32.mrf.mxu0
      %v3026 = vpop.f32.mrf.mxu0
      %3027 = vdwg.mxu0
      %3028 = vst [vmem:[#allocation2 + $0x78] sm:$0xff] %v3023
      %v3029 = vld [vmem:[%s2] sm:$0xff]
      %v3030 = vld [vmem:[#allocation2] sm:$0xff]
      %v3031 = vld [vmem:[#allocation2 + $0x8] sm:$0xff]
      %v3032 = vld [vmem:[#allocation2 + $0x10] sm:$0xff]
      %v3033 = vld [vmem:[#allocation2 + $0x18] sm:$0xff]
      %v3034 = vld [vmem:[#allocation2 + $0x20] sm:$0xff]
      %v3035 = vld [vmem:[#allocation2 + $0x28] sm:$0xff]
      %v3036 = vld [vmem:[#allocation2 + $0x30] sm:$0xff]
      %v3037 = vld [vmem:[#allocation2 + $0x38] sm:$0xff]
      %v3038 = vld [vmem:[#allocation2 + $0x40] sm:$0xff]
      %v3039 = vld [vmem:[#allocation2 + $0x48] sm:$0xff]
      %v3040 = vld [vmem:[#allocation2 + $0x50] sm:$0xff]
      %v3041 = vld [vmem:[#allocation2 + $0x58] sm:$0xff]
      %v3042 = vld [vmem:[#allocation2 + $0x60] sm:$0xff]
      %v3043 = vld [vmem:[#allocation2 + $0x68] sm:$0xff]
      %v3044 = vld [vmem:[#allocation2 + $0x70] sm:$0xff]
      %v3045 = vld [vmem:[#allocation2 + $0x78] sm:$0xff]
      %3046 = vmatprep.subr.mxu0 0.0
      %3047 = vmatpush1.msra.mxu0 %v3045
      %3048 = vmatprep.subr.mxu0 0.0
      %3049 = vmatpush1.msra.mxu0 %v3044
      %3050 = vmatprep.subr.mxu0 0.0
      %3051 = vmatpush1.msra.mxu0 %v3043
      %3052 = vmatprep.subr.mxu0 0.0
      %3053 = vmatpush1.msra.mxu0 %v3042
      %3054 = vmatprep.subr.mxu0 0.0
      %3055 = vmatpush1.msra.mxu0 %v3041
      %3056 = vmatprep.subr.mxu0 0.0
      %3057 = vmatpush1.msra.mxu0 %v3040
      %3058 = vmatprep.subr.mxu0 0.0
      %3059 = vmatpush1.msra.mxu0 %v3039
      %3060 = vmatprep.subr.mxu0 0.0
      %3061 = vmatpush1.msra.mxu0 %v3038
      %3062 = vmatprep.subr.mxu0 0.0
      %3063 = vmatpush1.msra.mxu0 %v3037
      %3064 = vmatprep.subr.mxu0 0.0
      %3065 = vmatpush1.msra.mxu0 %v3036
      %3066 = vmatprep.subr.mxu0 0.0
      %3067 = vmatpush1.msra.mxu0 %v3035
      %3068 = vmatprep.subr.mxu0 0.0
      %3069 = vmatpush1.msra.mxu0 %v3034
      %3070 = vmatprep.subr.mxu0 0.0
      %3071 = vmatpush1.msra.mxu0 %v3033
      %3072 = vmatprep.subr.mxu0 0.0
      %3073 = vmatpush1.msra.mxu0 %v3032
      %3074 = vmatprep.subr.mxu0 0.0
      %3075 = vmatpush1.msra.mxu0 %v3031
      %3076 = vmatprep.subr.mxu0 0.0
      %3077 = vmatpush1.msra.mxu0 %v3030
      %3078 = vmatprep.subr.mxu0 0.0
      %3079 = vmatpush2.msra.mxu0 0.0
      %3080 = vmatprep.subr.mxu0 0.0
      %3081 = vmatpush2.msra.mxu0 0.0
      %3082 = vmatprep.subr.mxu0 0.0
      %3083 = vmatpush2.msra.mxu0 0.0
      %3084 = vmatprep.subr.mxu0 0.0
      %3085 = vmatpush2.msra.mxu0 0.0
      %3086 = vmatprep.subr.mxu0 0.0
      %3087 = vmatpush2.msra.mxu0 0.0
      %3088 = vmatprep.subr.mxu0 0.0
      %3089 = vmatpush2.msra.mxu0 0.0
      %3090 = vmatprep.subr.mxu0 0.0
      %3091 = vmatpush2.msra.mxu0 0.0
      %3092 = vmatprep.subr.mxu0 0.0
      %3093 = vmatpush2.msra.mxu0 0.0
      %3094 = vmatprep.subr.mxu0 0.0
      %3095 = vmatpush2.msra.mxu0 0.0
      %3096 = vmatprep.subr.mxu0 0.0
      %3097 = vmatpush2.msra.mxu0 0.0
      %3098 = vmatprep.subr.mxu0 0.0
      %3099 = vmatpush2.msra.mxu0 0.0
      %3100 = vmatprep.subr.mxu0 0.0
      %3101 = vmatpush2.msra.mxu0 0.0
      %3102 = vmatprep.subr.mxu0 0.0
      %3103 = vmatpush2.msra.mxu0 0.0
      %3104 = vmatprep.subr.mxu0 0.0
      %3105 = vmatpush2.msra.mxu0 0.0
      %3106 = vmatprep.subr.mxu0 0.0
      %3107 = vmatpush2.msra.mxu0 0.0
      %3108 = vmatprep.subr.mxu0 0.0
      %3109 = vmatpush2.msra.mxu0 0.0
      %3110 = vmatprep.mubr.f32.mxu0 0.0
      %3111 = vmatmul.mubr.f32.gmra.mxu0 %v3029
      %v3112 = vpop.f32.mrf.mxu0
      %v3113 = vadd.f32 0.0, %v3112
      %v3114 = vpop.f32.mrf.mxu0
      %3115 = vdwg.mxu0
      %v3116 = vadd.f32 %v303, %v3113
      %3117 = vst [vmem:[%s222] sm:$0xff] %v3116
      %p3118 = scmp.lt.s32.totalorder %s16, 1
      %s3119 = scalar_select %p3118, %s16, 1
      %s3120 = smul.addr %s3119, 8
      %s3121 = scalar_lea.vmem %s5, %s3120
      // Predicated region
      $region41: #{random_project_linear_operator.1} parent=39 // pred_check
        %p3122 = pneg %p144
      $region42: #{random_project_linear_operator.1} parent=39 // pred_check_branch
        %3124 = sbr.rel (%p3122) target = $region44
      $region43: #{random_project_linear_operator.1} parent=39 // pred_region
        _
      $region44: #{random_project_linear_operator.1} parent=39 // pred_fallthru
        _
    $region40: #{random_project_linear_operator.1} parent=5 // pred_fallthru
      _
    %p3125 = scmp.le.s32.totalorder 2, %s11
    // Predicated region
    $region45: #{random_project_linear_operator.1} parent=5 // pred_check
      %p3126 = pneg %p3125
    $region46: #{random_project_linear_operator.1} parent=5 // pred_check_branch
      %3128 = sbr.rel (%p3126) target = $region48
    $region47: #{random_project_linear_operator.1} parent=5 // pred_region
      %s3129 = ssub.s32 %s11, 2
      // Predicated region
      $region49: #{random_project_linear_operator.1} parent=47 // pred_check
        %p3130 = pneg %p150
      $region50: #{random_project_linear_operator.1} parent=47 // pred_check_branch
        %3132 = sbr.rel (%p3130) target = $region52
      $region51: #{random_project_linear_operator.1} parent=47 // pred_region
        %p3133 = scmp.lt.s32.totalorder %s17, 1
        %s3134 = scalar_select %p3133, %s17, 1
        %s3135 = smul.addr %s3134, 8
        %s3136 = scalar_lea.vmem %s5, %s3135
      $region52: #{random_project_linear_operator.1} parent=47 // pred_fallthru
        _
    $region48: #{random_project_linear_operator.1} parent=5 // pred_fallthru
      _
  $region6: #{random_project_linear_operator.1} parent=0 // loop_footer
    %s15 = sadd.s32 1, %s11
  $region7: #{random_project_linear_operator.1} parent=0 // loop_footer_branch
    %10 = sbr.rel target = $region3
  $region8: #{random_project_linear_operator.1} parent=0 // loop_exit
    _

</llo_original>
